<compile_context>
chip_gen: v6e
topology: v6e:2x2x1
jax: 0.10.0
libtpu: 0.0.40
codegen_flags: <defaults>
</compile_context>

<pallas_src>
import numpy as np
import jax
import jax.numpy as jnp
from jax import lax
from jax.experimental import pallas as pl
from jax.experimental.pallas import tpu as pltpu

# float32 eps, matching torch.nn.RMSNorm(eps=None) -> torch.finfo(float32).eps
RMS_EPS = np.float32(np.finfo(np.float32).eps)

_MS = getattr(pltpu, "MemorySpace", None)
_VMEM_SPACE = _MS.VMEM if _MS is not None else pltpu.VMEM


def _make_kernel(n_heads, kv_heads, d_head, q_tile, compute_dtype):
    inv_sqrt2 = np.float32(1.0 / np.sqrt(2.0))
    neg_inf = np.float32(-np.inf)

    def rmsnorm(v, gamma):
        ms = jnp.mean(v * v, axis=-1, keepdims=True)
        return v * lax.rsqrt(ms + RMS_EPS) * gamma

    def kernel(x_ref, wq_ref, wk_ref, wv_ref, wo_ref, g_attn_ref,
               rope_q_ref, rope_k_ref,
               w_up_ref, b_up_ref, w_g_ref, b_g_ref,
               w_down_ref, b_down_ref, g_mlp_ref,
               out_ref, k_scr, v_scr, scat_ref):
        qi = pl.program_id(1)
        q_start = pl.multiple_of(qi * q_tile, q_tile)
        g_attn = g_attn_ref[0]

        # ---- once per batch: full-seq RMSNorm -> K/V projections -> rope, cached ----
        @pl.when(qi == 0)
        def _():
            xn_all = rmsnorm(x_ref[0], g_attn).astype(compute_dtype)        # (N, D)
            k = jnp.dot(xn_all, wk_ref[...], preferred_element_type=jnp.float32)
            v = jnp.dot(xn_all, wv_ref[...], preferred_element_type=jnp.float32)
            rope_k = rope_k_ref[...]                                         # (N, DH)
            for j in range(kv_heads):
                sl = slice(j * d_head, (j + 1) * d_head)
                k_scr[j] = (k[:, sl] * rope_k).astype(compute_dtype)
                v_scr[j] = v[:, sl].astype(compute_dtype)

        # ---- per query tile ----
        x_q = x_ref[0, pl.ds(q_start, q_tile), :]                            # (TQ, D) f32
        xn_q = rmsnorm(x_q, g_attn)
        q = jnp.dot(xn_q.astype(compute_dtype), wq_ref[...],
                    preferred_element_type=jnp.float32)                      # (TQ, D)
        # rope-as-written (cos+sin factor); 1/sqrt(d_head) folded in on the host.
        q = (q * rope_q_ref[...]).astype(compute_dtype)

        row_ids = q_start + lax.broadcasted_iota(jnp.int32, (q_tile, q_tile), 0)
        col_base = lax.broadcasted_iota(jnp.int32, (q_tile, q_tile), 1)
        n_kv_tiles = qi + 1                           # causal bound on visited key tiles

        # TODO(synk): for large n_heads switch to lax.fori_loop over heads with pl.ds
        # slices, and batch the `reps` heads of a KV group into one (reps*TQ, DH) matmul.
        for h in range(n_heads):
            j = h % kv_heads                          # torch k.repeat(1, reps, 1, 1)
            qh = q[:, h * d_head:(h + 1) * d_head]    # (TQ, DH)

            def body(t, carry, qh=qh, j=j):
                m, l, acc = carry
                t_start = pl.multiple_of(t * q_tile, q_tile)
                k_t = k_scr[j, pl.ds(t_start, q_tile), :]     # (TK, DH) leading-axis view
                v_t = v_scr[j, pl.ds(t_start, q_tile), :]
                # contract last dims of both operands: no transposed K copy
                s = lax.dot_general(qh, k_t, (((1,), (1,)), ((), ())),
                                    preferred_element_type=jnp.float32)      # (TQ, TK)
                keep = row_ids >= (t_start + col_base)        # only bites on diag tile
                s = jnp.where(keep, s, neg_inf)
                m_new = jnp.maximum(m, jnp.max(s, axis=-1, keepdims=True))
                alpha = jnp.exp(m - m_new)
                p = jnp.exp(s - m_new)
                l_new = alpha * l + jnp.sum(p, axis=-1, keepdims=True)
                acc_new = alpha * acc + jnp.dot(p.astype(compute_dtype), v_t,
                                                preferred_element_type=jnp.float32)
                return m_new, l_new, acc_new

            init = (jnp.full((q_tile, 1), -jnp.inf, jnp.float32),
                    jnp.zeros((q_tile, 1), jnp.float32),
                    jnp.zeros((q_tile, d_head), jnp.float32))
            m, l, acc = lax.fori_loop(0, n_kv_tiles, body, init)

            # deferred normalization: EUP approx reciprocal + one Newton step (cheap, exact)
            r = pl.reciprocal(l, approx=True)
            r = r * (2.0 - l * r)
            # TODO(synk): for d_head < 128 these are masked partial stores; a host-side
            # head permutation would allow one lane-dense store per KV group.
            scat_ref[:, h * d_head:(h + 1) * d_head] = acc * r

        o = jnp.dot(scat_ref[...].astype(compute_dtype), wo_ref[...],
                    preferred_element_type=jnp.float32)                      # (TQ, D)
        x_res = x_q + o

        # -------- MLP (GeGLU as written: gelu applied AFTER the up*gate product) --------
        xn2 = rmsnorm(x_res, g_mlp_ref[0]).astype(compute_dtype)
        up = jnp.dot(xn2, w_up_ref[...], preferred_element_type=jnp.float32) + b_up_ref[0]
        g = jnp.dot(xn2, w_g_ref[...], preferred_element_type=jnp.float32) + b_g_ref[0]
        hmid = up * g
        hmid = 0.5 * hmid * (1.0 + lax.erf(hmid * inv_sqrt2))                # exact GELU
        down = jnp.dot(hmid.astype(compute_dtype), w_down_ref[...],
                       preferred_element_type=jnp.float32) + b_down_ref[0]
        out_ref[0] = x_res + down

    return kernel


def _pick_q_tile(n, target):
    if n <= target:
        return n
    for t in range(min(target, n), 7, -1):
        if n % t == 0 and t % 8 == 0:
            return t
    return n


def _rup(v, m):
    return ((v + m - 1) // m) * m


def transformer_block_pallas(x, params, *, n_heads, kv_heads, q_tile=None,
                             compute_dtype=jnp.float32):
    # TODO(synk): only the module's default (causal) attention_mask path is implemented;
    # an arbitrary user-provided attention_mask is not supported.
    B, N, D = x.shape
    d_head = D // n_heads
    kvd = kv_heads * d_head
    DFF = params["w_up"].shape[1]

    # Generation-aware VMEM capacity (v7x = 64 MiB, v5e/v6e = 128 MiB).
    try:
        vmem_cap = int(getattr(pltpu.get_tpu_info(), "vmem_capacity_bytes", 64 << 20))
    except Exception:
        vmem_cap = 64 << 20

    tq_target = 256 if vmem_cap >= (96 << 20) else 128
    TQ = _pick_q_tile(N, tq_target) if q_tile is None else q_tile
    assert N % TQ == 0
    assert TQ == N or TQ % 8 == 0

    # rope factor (cos + sin) with the module's sign flip on even positions;
    # fold 1/sqrt(d_head) into the query-side factor.
    idx = jnp.arange(d_head)
    theta = jnp.power(10000.0, -2.0 * (idx // 2).astype(jnp.float32) / d_head)
    pos = jnp.arange(N).astype(jnp.float32)
    ang = jnp.outer(pos, theta)
    cos = jnp.cos(ang)
    sin = jnp.sin(ang)
    sin = sin.at[0::2].set(-sin[0::2])
    rope = (cos + sin).astype(jnp.float32)                                      # (N, DH)
    rope_q = jnp.tile(rope, (1, n_heads)) * np.float32(1.0 / np.sqrt(d_head))   # (N, D)
    rope_k = rope                                                               # (N, DH)

    cd = compute_dtype
    cdb = jnp.dtype(cd).itemsize
    wq = params["wq"].astype(cd)
    wk = params["wk"].astype(cd)
    wv = params["wv"].astype(cd)
    wo = params["wo"].astype(cd)
    w_up = params["w_up"].astype(cd)
    w_g = params["w_g"].astype(cd)
    w_down = params["w_down"].astype(cd)

    # ---- VMEM budget from the actual buffers, clamped to the chip capacity ----
    d_pad, dff_pad, kvd_pad = _rup(D, 128), _rup(DFF, 128), _rup(kvd, 128)
    dh_pad, n_pad, tq_pad = _rup(d_head, 128), _rup(N, 8), _rup(TQ, 8)
    resident = cdb * (2 * D * d_pad + 2 * D * kvd_pad + 2 * D * dff_pad + DFF * d_pad) \
        + 4 * (3 * 8 * d_pad + 2 * 8 * dff_pad + n_pad * dh_pad)
    blocked = 2 * 4 * (n_pad * d_pad + 2 * tq_pad * d_pad)          # x, rope_q, out (2-buf)
    scratch = 2 * kv_heads * n_pad * dh_pad * cdb + 4 * tq_pad * d_pad
    work = 4 * (n_pad * d_pad + 2 * n_pad * kvd_pad                 # init temporaries
                + 6 * tq_pad * d_pad + 4 * tq_pad * _rup(TQ, 128)   # q / residual / scores
                + 3 * tq_pad * dff_pad)                             # MLP temporaries
    budget = resident + blocked + scratch + work + (4 << 20)
    hard_cap = vmem_cap - (2 << 20)
    vmem_limit = int(min(max(budget, 32 << 20), hard_cap))

    kernel = _make_kernel(n_heads, kv_heads, d_head, TQ, cd)

    def resident_spec():
        # whole array resident in VMEM, single copy (not double-buffered)
        return pl.BlockSpec(memory_space=_VMEM_SPACE)

    in_specs = [
        pl.BlockSpec((1, N, D), lambda b, qi: (b, 0, 0)),  # x: full seq, constant over qi
        resident_spec(),                                   # wq
        resident_spec(),                                   # wk
        resident_spec(),                                   # wv
        resident_spec(),                                   # wo
        resident_spec(),                                   # rmsnorm gamma (attn)
        pl.BlockSpec((TQ, D), lambda b, qi: (qi, 0)),      # rope_q (scaled, head-tiled)
        resident_spec(),                                   # rope_k (single head)
        resident_spec(),                                   # w_up
        resident_spec(),                                   # b_up
        resident_spec(),                                   # w_g
        resident_spec(),                                   # b_g
        resident_spec(),                                   # w_down
        resident_spec(),                                   # b_down
        resident_spec(),                                   # rmsnorm gamma (mlp)
    ]
    out_spec = pl.BlockSpec((1, TQ, D), lambda b, qi: (b, qi, 0))

    out = pl.pallas_call(
        kernel,
        out_shape=jax.ShapeDtypeStruct((B, N, D), jnp.float32),
        grid_spec=pltpu.PrefetchScalarGridSpec(
            num_scalar_prefetch=0,
            grid=(B, N // TQ),
            in_specs=in_specs,
            out_specs=out_spec,
            scratch_shapes=[
                pltpu.VMEM((kv_heads, N, d_head), cd),   # K cache (rope applied), per batch
                pltpu.VMEM((kv_heads, N, d_head), cd),   # V cache, per batch
                pltpu.VMEM((TQ, D), jnp.float32),        # per-tile head-output slab
            ]),
        compiler_params=pltpu.CompilerParams(
            # K/V scratch is carried across the query-tile axis -> it must be sequential;
            # batch stays "parallel" so megacore splits on batch.
            # TODO(synk): for B == 1 on v7x, split the qi axis across cores instead.
            dimension_semantics=("parallel", "arbitrary"),
            vmem_limit_bytes=vmem_limit),
    )(x,
      wq, wk, wv, wo, params["g_attn"],
      rope_q, rope_k,
      w_up, params["b_up"], w_g, params["b_g"],
      w_down, params["b_down"], params["g_mlp"])
    return out


def transformer_block_ref(x, params, *, n_heads, kv_heads):
    """Pure-JAX reference mirroring the PyTorch forward exactly (f32)."""
    B, N, D = x.shape
    d_head = D // n_heads

    def rmsnorm(v, g):
        ms = jnp.mean(v * v, axis=-1, keepdims=True)
        return v * lax.rsqrt(ms + RMS_EPS) * g

    idx = jnp.arange(d_head)
    theta = jnp.power(10000.0, -2.0 * (idx // 2).astype(jnp.float32) / d_head)
    pos = jnp.arange(N).astype(jnp.float32)
    ang = jnp.outer(pos, theta)
    cos = jnp.cos(ang)
    sin = jnp.sin(ang)
    sin = sin.at[0::2].set(-sin[0::2])

    xn = rmsnorm(x, params["g_attn"][0])
    q = xn @ params["wq"]
    k = xn @ params["wk"]
    v = xn @ params["wv"]
    q = q.reshape(B, N, n_heads, d_head).transpose(0, 2, 1, 3)
    k = k.reshape(B, N, kv_heads, d_head).transpose(0, 2, 1, 3)
    v = v.reshape(B, N, kv_heads, d_head).transpose(0, 2, 1, 3)
    q = q * cos + q * sin
    k = k * cos + k * sin
    reps = n_heads // kv_heads
    k = jnp.tile(k, (1, reps, 1, 1))
    v = jnp.tile(v, (1, reps, 1, 1))
    qkt = jnp.einsum("bhqa,bhka->bhqk", q, k) / np.float32(np.sqrt(d_head))
    mask = jnp.tril(jnp.ones((N, N), dtype=bool))
    qkt = jnp.where(mask, qkt, -jnp.inf)
    s = jax.nn.softmax(qkt, axis=-1) @ v
    s = s.transpose(0, 2, 1, 3).reshape(B, N, D)
    o = s @ params["wo"]
    x = x + o

    xn2 = rmsnorm(x, params["g_mlp"][0])
    up = xn2 @ params["w_up"] + params["b_up"][0]
    g = xn2 @ params["w_g"] + params["b_g"][0]
    h = up * g
    h = 0.5 * h * (1.0 + lax.erf(h / np.float32(np.sqrt(2.0))))
    down = h @ params["w_down"] + params["b_down"][0]
    return x + down


if __name__ == "__main__":
    # Small config consistent with the module.
    D = 32
    N_HEADS, KV_HEADS = 4, 2
    D_FF = 64
    D_HEAD = D // N_HEADS

    key = jax.random.PRNGKey(0)
    ks = jax.random.split(key, 12)

    def init(k, shape, scale=0.05):
        return (jax.random.normal(k, shape, dtype=jnp.float32) * scale).astype(jnp.float32)

    params = {
        "wq": init(ks[0], (D, D)),
        "wk": init(ks[1], (D, KV_HEADS * D_HEAD)),
        "wv": init(ks[2], (D, KV_HEADS * D_HEAD)),
        "wo": init(ks[3], (D, D)),
        "g_attn": jnp.ones((1, D), jnp.float32) + init(ks[4], (1, D), 0.01),
        "w_up": init(ks[5], (D, D_FF)),
        "b_up": init(ks[6], (1, D_FF)),
        "w_g": init(ks[7], (D, D_FF)),
        "b_g": init(ks[8], (1, D_FF)),
        "w_down": init(ks[9], (D_FF, D)),
        "b_down": init(ks[10], (1, D)),
        "g_mlp": jnp.ones((1, D), jnp.float32) + init(ks[11], (1, D), 0.01),
    }

    # --- test 1: single query tile (TQ == N), f32 compute ---
    B, N = 2, 8
    x = jax.random.normal(jax.random.PRNGKey(42), (B, N, D), dtype=jnp.float32)
    ref = jax.block_until_ready(
        transformer_block_ref(x, params, n_heads=N_HEADS, kv_heads=KV_HEADS))

    out_f32 = jax.block_until_ready(
        transformer_block_pallas(x, params, n_heads=N_HEADS, kv_heads=KV_HEADS,
                                 compute_dtype=jnp.float32))
    np.testing.assert_allclose(np.asarray(out_f32), np.asarray(ref), rtol=3e-5, atol=3e-5)

    # --- test 2: bf16 MXU path (f32 accumulation), looser tolerance ---
    out_bf16 = jax.block_until_ready(
        transformer_block_pallas(x, params, n_heads=N_HEADS, kv_heads=KV_HEADS,
                                 compute_dtype=jnp.bfloat16))
    np.testing.assert_allclose(np.asarray(out_bf16), np.asarray(ref), rtol=3e-2, atol=3e-2)

    # --- test 3: multi-tile query axis (exercises per-batch K/V caching in scratch,
    #     the causal-bounded flash loop, and the in-kernel mask offsets) ---
    B2, N2 = 2, 16
    x2 = jax.random.normal(jax.random.PRNGKey(7), (B2, N2, D), dtype=jnp.float32)
    ref2 = jax.block_until_ready(
        transformer_block_ref(x2, params, n_heads=N_HEADS, kv_heads=KV_HEADS))
    out2 = jax.block_until_ready(
        transformer_block_pallas(x2, params, n_heads=N_HEADS, kv_heads=KV_HEADS,
                                 q_tile=8, compute_dtype=jnp.float32))
    np.testing.assert_allclose(np.asarray(out2), np.asarray(ref2), rtol=3e-5, atol=3e-5)

    print("KERNEL_OK")
</pallas_src>

<mosaic_0001>
module attributes {stable_mosaic.version = 11 : i64} {
  func.func @kernel(%arg0: i32, %arg1: i32, %arg2: memref<1x8x32xf32, #tpu.memory_space<vmem>>, %arg3: memref<32x32xf32, #tpu.memory_space<vmem>>, %arg4: memref<32x16xf32, #tpu.memory_space<vmem>>, %arg5: memref<32x16xf32, #tpu.memory_space<vmem>>, %arg6: memref<32x32xf32, #tpu.memory_space<vmem>>, %arg7: memref<1x32xf32, #tpu.memory_space<vmem>>, %arg8: memref<8x32xf32, #tpu.memory_space<vmem>>, %arg9: memref<8x8xf32, #tpu.memory_space<vmem>>, %arg10: memref<32x64xf32, #tpu.memory_space<vmem>>, %arg11: memref<1x64xf32, #tpu.memory_space<vmem>>, %arg12: memref<32x64xf32, #tpu.memory_space<vmem>>, %arg13: memref<1x64xf32, #tpu.memory_space<vmem>>, %arg14: memref<64x32xf32, #tpu.memory_space<vmem>>, %arg15: memref<1x32xf32, #tpu.memory_space<vmem>>, %arg16: memref<1x32xf32, #tpu.memory_space<vmem>>, %arg17: memref<1x8x32xf32, #tpu.memory_space<vmem>>, %arg18: memref<2x8x8xf32, #tpu.memory_space<vmem>>, %arg19: memref<2x8x8xf32, #tpu.memory_space<vmem>>, %arg20: memref<8x32xf32, #tpu.memory_space<vmem>>) attributes {dimension_semantics = [#tpu.dimension_semantics<parallel>, #tpu.dimension_semantics<arbitrary>], iteration_bounds = array<i64: 2, 1>, scalar_prefetch = 0 : i64, scratch_operands = 3 : i64, tpu.core_type = #tpu.core_type<tc>, window_params = [{transform_indices = @transform_0, window_bounds = array<i64: 1, 8, 32>}, {pipeline_mode = #tpu.pipeline_mode<synchronous>, transform_indices = @transform_1, window_bounds = array<i64: 32, 32>}, {pipeline_mode = #tpu.pipeline_mode<synchronous>, transform_indices = @transform_2, window_bounds = array<i64: 32, 16>}, {pipeline_mode = #tpu.pipeline_mode<synchronous>, transform_indices = @transform_3, window_bounds = array<i64: 32, 16>}, {pipeline_mode = #tpu.pipeline_mode<synchronous>, transform_indices = @transform_4, window_bounds = array<i64: 32, 32>}, {pipeline_mode = #tpu.pipeline_mode<synchronous>, transform_indices = @transform_5, window_bounds = array<i64: 1, 32>}, {transform_indices = @transform_6, window_bounds = array<i64: 8, 32>}, {pipeline_mode = #tpu.pipeline_mode<synchronous>, transform_indices = @transform_7, window_bounds = array<i64: 8, 8>}, {pipeline_mode = #tpu.pipeline_mode<synchronous>, transform_indices = @transform_8, window_bounds = array<i64: 32, 64>}, {pipeline_mode = #tpu.pipeline_mode<synchronous>, transform_indices = @transform_9, window_bounds = array<i64: 1, 64>}, {pipeline_mode = #tpu.pipeline_mode<synchronous>, transform_indices = @transform_10, window_bounds = array<i64: 32, 64>}, {pipeline_mode = #tpu.pipeline_mode<synchronous>, transform_indices = @transform_11, window_bounds = array<i64: 1, 64>}, {pipeline_mode = #tpu.pipeline_mode<synchronous>, transform_indices = @transform_12, window_bounds = array<i64: 64, 32>}, {pipeline_mode = #tpu.pipeline_mode<synchronous>, transform_indices = @transform_13, window_bounds = array<i64: 1, 32>}, {pipeline_mode = #tpu.pipeline_mode<synchronous>, transform_indices = @transform_14, window_bounds = array<i64: 1, 32>}, {transform_indices = @transform_15, window_bounds = array<i64: 1, 8, 32>}]} {
    %c8_i32 = arith.constant 8 : i32
    %0 = arith.muli %arg1, %c8_i32 : i32
    %1 = tpu.assume_multiple %0, 8 : i32
    %c0 = arith.constant 0 : index
    %c0_0 = arith.constant 0 : index
    %2 = vector.load %arg7[%c0, %c0_0] : memref<1x32xf32, #tpu.memory_space<vmem>>, vector<1x32xf32>
    %3 = vector.shape_cast %2 : vector<1x32xf32> to vector<32xf32>
    %c0_i32 = arith.constant 0 : i32
    %4 = arith.cmpi eq, %arg1, %c0_i32 : i32
    %5 = arith.extui %4 : i1 to i32
    %c0_i32_1 = arith.constant 0 : i32
    %6 = arith.cmpi ne, %5, %c0_i32_1 : i32
    scf.if %6 {
      %c0_71 = arith.constant 0 : index
      %c0_72 = arith.constant 0 : index
      %c0_73 = arith.constant 0 : index
      %145 = vector.load %arg2[%c0_71, %c0_72, %c0_73] : memref<1x8x32xf32, #tpu.memory_space<vmem>>, vector<1x8x32xf32>
      %146 = vector.shape_cast %145 : vector<1x8x32xf32> to vector<8x32xf32>
      %147 = arith.mulf %146, %146 : vector<8x32xf32>
      %cst_74 = arith.constant dense<0.000000e+00> : vector<8xf32>
      %148 = vector.multi_reduction <add>, %147, %cst_74 [1] : vector<8x32xf32> to vector<8xf32>
      %149 = vector.shape_cast %148 : vector<8xf32> to vector<8x1xf32>
      %cst_75 = arith.constant 3.200000e+01 : f32
      %150 = vector.broadcast %cst_75 : f32 to vector<8x1xf32>
      %151 = arith.divf %149, %150 : vector<8x1xf32>
      %cst_76 = arith.constant 1.1920929E-7 : f32
      %152 = vector.broadcast %cst_76 : f32 to vector<8x1xf32>
      %153 = arith.addf %151, %152 : vector<8x1xf32>
      %154 = math.rsqrt %153 : vector<8x1xf32>
      %155 = vector.broadcast %154 : vector<8x1xf32> to vector<8x32xf32>
      %156 = arith.mulf %146, %155 : vector<8x32xf32>
      %157 = vector.shape_cast %3 : vector<32xf32> to vector<1x32xf32>
      %158 = vector.broadcast %157 : vector<1x32xf32> to vector<8x32xf32>
      %159 = arith.mulf %156, %158 : vector<8x32xf32>
      %c0_77 = arith.constant 0 : index
      %c0_78 = arith.constant 0 : index
      %160 = vector.load %arg4[%c0_77, %c0_78] : memref<32x16xf32, #tpu.memory_space<vmem>>, vector<32x16xf32>
      %cst_79 = arith.constant dense<0.000000e+00> : vector<8x16xf32>
      %161 = tpu.matmul %159, %160, %cst_79 {dimension_numbers = #tpu.dot_dimension_numbers<[1], [0], [0], [1], [0, 0, 1, 1], [], []>} : vector<8x32xf32>, vector<32x16xf32>, vector<8x16xf32> -> vector<8x16xf32>
      %c0_80 = arith.constant 0 : index
      %c0_81 = arith.constant 0 : index
      %162 = vector.load %arg5[%c0_80, %c0_81] : memref<32x16xf32, #tpu.memory_space<vmem>>, vector<32x16xf32>
      %cst_82 = arith.constant dense<0.000000e+00> : vector<8x16xf32>
      %163 = tpu.matmul %159, %162, %cst_82 {dimension_numbers = #tpu.dot_dimension_numbers<[1], [0], [0], [1], [0, 0, 1, 1], [], []>} : vector<8x32xf32>, vector<32x16xf32>, vector<8x16xf32> -> vector<8x16xf32>
      %c0_83 = arith.constant 0 : index
      %c0_84 = arith.constant 0 : index
      %164 = vector.load %arg9[%c0_83, %c0_84] : memref<8x8xf32, #tpu.memory_space<vmem>>, vector<8x8xf32>
      %165 = vector.extract_strided_slice %161 {offsets = [0, 0], sizes = [8, 8], strides = [1, 1]} : vector<8x16xf32> to vector<8x8xf32>
      %166 = arith.mulf %165, %164 : vector<8x8xf32>
      %c0_85 = arith.constant 0 : index
      %c0_86 = arith.constant 0 : index
      %c0_87 = arith.constant 0 : index
      %167 = vector.load %arg18[%c0_85, %c0_86, %c0_87] : memref<2x8x8xf32, #tpu.memory_space<vmem>>, vector<1x8x8xf32>
      %168 = vector.shape_cast %167 : vector<1x8x8xf32> to vector<8x8xf32>
      %169 = vector.shape_cast %166 : vector<8x8xf32> to vector<1x8x8xf32>
      tpu.vector_store %arg18[%c0_85, %c0_86, %c0_87], %169 {strides = array<i32>} : memref<2x8x8xf32, #tpu.memory_space<vmem>>, vector<1x8x8xf32>,
      %170 = vector.extract_strided_slice %163 {offsets = [0, 0], sizes = [8, 8], strides = [1, 1]} : vector<8x16xf32> to vector<8x8xf32>
      %c0_88 = arith.constant 0 : index
      %c0_89 = arith.constant 0 : index
      %c0_90 = arith.constant 0 : index
      %171 = vector.load %arg19[%c0_88, %c0_89, %c0_90] : memref<2x8x8xf32, #tpu.memory_space<vmem>>, vector<1x8x8xf32>
      %172 = vector.shape_cast %171 : vector<1x8x8xf32> to vector<8x8xf32>
      %173 = vector.shape_cast %170 : vector<8x8xf32> to vector<1x8x8xf32>
      tpu.vector_store %arg19[%c0_88, %c0_89, %c0_90], %173 {strides = array<i32>} : memref<2x8x8xf32, #tpu.memory_space<vmem>>, vector<1x8x8xf32>,
      %174 = vector.extract_strided_slice %161 {offsets = [0, 8], sizes = [8, 8], strides = [1, 1]} : vector<8x16xf32> to vector<8x8xf32>
      %175 = arith.mulf %174, %164 : vector<8x8xf32>
      %c1 = arith.constant 1 : index
      %c0_91 = arith.constant 0 : index
      %c0_92 = arith.constant 0 : index
      %176 = vector.load %arg18[%c1, %c0_91, %c0_92] : memref<2x8x8xf32, #tpu.memory_space<vmem>>, vector<1x8x8xf32>
      %177 = vector.shape_cast %176 : vector<1x8x8xf32> to vector<8x8xf32>
      %178 = vector.shape_cast %175 : vector<8x8xf32> to vector<1x8x8xf32>
      tpu.vector_store %arg18[%c1, %c0_91, %c0_92], %178 {strides = array<i32>} : memref<2x8x8xf32, #tpu.memory_space<vmem>>, vector<1x8x8xf32>,
      %179 = vector.extract_strided_slice %163 {offsets = [0, 8], sizes = [8, 8], strides = [1, 1]} : vector<8x16xf32> to vector<8x8xf32>
      %c1_93 = arith.constant 1 : index
      %c0_94 = arith.constant 0 : index
      %c0_95 = arith.constant 0 : index
      %180 = vector.load %arg19[%c1_93, %c0_94, %c0_95] : memref<2x8x8xf32, #tpu.memory_space<vmem>>, vector<1x8x8xf32>
      %181 = vector.shape_cast %180 : vector<1x8x8xf32> to vector<8x8xf32>
      %182 = vector.shape_cast %179 : vector<8x8xf32> to vector<1x8x8xf32>
      tpu.vector_store %arg19[%c1_93, %c0_94, %c0_95], %182 {strides = array<i32>} : memref<2x8x8xf32, #tpu.memory_space<vmem>>, vector<1x8x8xf32>,
    } else {
    }
    %c0_2 = arith.constant 0 : index
    %7 = arith.index_cast %1 : i32 to index
    %c0_3 = arith.constant 0 : index
    %8 = vector.load %arg2[%c0_2, %7, %c0_3] : memref<1x8x32xf32, #tpu.memory_space<vmem>>, vector<1x8x32xf32>
    %9 = vector.shape_cast %8 : vector<1x8x32xf32> to vector<8x32xf32>
    %10 = arith.mulf %9, %9 : vector<8x32xf32>
    %cst = arith.constant dense<0.000000e+00> : vector<8xf32>
    %11 = vector.multi_reduction <add>, %10, %cst [1] : vector<8x32xf32> to vector<8xf32>
    %12 = vector.shape_cast %11 : vector<8xf32> to vector<8x1xf32>
    %cst_4 = arith.constant 3.200000e+01 : f32
    %13 = vector.broadcast %cst_4 : f32 to vector<8x1xf32>
    %14 = arith.divf %12, %13 : vector<8x1xf32>
    %cst_5 = arith.constant 1.1920929E-7 : f32
    %15 = vector.broadcast %cst_5 : f32 to vector<8x1xf32>
    %16 = arith.addf %14, %15 : vector<8x1xf32>
    %17 = math.rsqrt %16 : vector<8x1xf32>
    %18 = vector.broadcast %17 : vector<8x1xf32> to vector<8x32xf32>
    %19 = arith.mulf %9, %18 : vector<8x32xf32>
    %20 = vector.shape_cast %3 : vector<32xf32> to vector<1x32xf32>
    %21 = vector.broadcast %20 : vector<1x32xf32> to vector<8x32xf32>
    %22 = arith.mulf %19, %21 : vector<8x32xf32>
    %c0_6 = arith.constant 0 : index
    %c0_7 = arith.constant 0 : index
    %23 = vector.load %arg3[%c0_6, %c0_7] : memref<32x32xf32, #tpu.memory_space<vmem>>, vector<32x32xf32>
    %cst_8 = arith.constant dense<0.000000e+00> : vector<8x32xf32>
    %24 = tpu.matmul %22, %23, %cst_8 {dimension_numbers = #tpu.dot_dimension_numbers<[1], [0], [0], [1], [0, 0, 1, 1], [], []>} : vector<8x32xf32>, vector<32x32xf32>, vector<8x32xf32> -> vector<8x32xf32>
    %c0_9 = arith.constant 0 : index
    %c0_10 = arith.constant 0 : index
    %25 = vector.load %arg8[%c0_9, %c0_10] : memref<8x32xf32, #tpu.memory_space<vmem>>, vector<8x32xf32>
    %26 = arith.mulf %24, %25 : vector<8x32xf32>
    %27 = tpu.iota {dimensions = array<i32: 0>} : vector<8x8xi32>
    %28 = vector.broadcast %1 : i32 to vector<8x8xi32>
    %29 = arith.addi %28, %27 : vector<8x8xi32>
    %30 = tpu.iota {dimensions = array<i32: 1>} : vector<8x8xi32>
    %c1_i32 = arith.constant 1 : i32
    %31 = arith.addi %arg1, %c1_i32 : i32
    %32 = vector.extract_strided_slice %26 {offsets = [0, 0], sizes = [8, 8], strides = [1, 1]} : vector<8x32xf32> to vector<8x8xf32>
    %cst_11 = arith.constant 0xFF800000 : f32
    %33 = vector.broadcast %cst_11 : f32 to vector<8x1xf32>
    %cst_12 = arith.constant 0.000000e+00 : f32
    %34 = vector.broadcast %cst_12 : f32 to vector<8x1xf32>
    %cst_13 = arith.constant 0.000000e+00 : f32
    %35 = vector.broadcast %cst_13 : f32 to vector<8x8xf32>
    %c0_i32_14 = arith.constant 0 : i32
    %36 = arith.subi %31, %c0_i32_14 : i32
    %37 = arith.addi %c0_i32_14, %36 : i32
    %c1_i32_15 = arith.constant 1 : i32
    %38:3 = scf.for %arg21 = %c0_i32_14 to %37 step %c1_i32_15 iter_args(%arg22 = %33, %arg23 = %34, %arg24 = %35) -> (vector<8x1xf32>, vector<8x1xf32>, vector<8x8xf32>)  : i32 {
      %c8_i32_71 = arith.constant 8 : i32
      %145 = arith.muli %arg21, %c8_i32_71 : i32
      %146 = tpu.assume_multiple %145, 8 : i32
      %c0_72 = arith.constant 0 : index
      %147 = arith.index_cast %146 : i32 to index
      %c0_73 = arith.constant 0 : index
      %148 = vector.load %arg18[%c0_72, %147, %c0_73] : memref<2x8x8xf32, #tpu.memory_space<vmem>>, vector<1x8x8xf32>
      %149 = vector.shape_cast %148 : vector<1x8x8xf32> to vector<8x8xf32>
      %c0_74 = arith.constant 0 : index
      %150 = arith.index_cast %146 : i32 to index
      %c0_75 = arith.constant 0 : index
      %151 = vector.load %arg19[%c0_74, %150, %c0_75] : memref<2x8x8xf32, #tpu.memory_space<vmem>>, vector<1x8x8xf32>
      %152 = vector.shape_cast %151 : vector<1x8x8xf32> to vector<8x8xf32>
      %cst_76 = arith.constant dense<0.000000e+00> : vector<8x8xf32>
      %153 = tpu.matmul %32, %149, %cst_76 {dimension_numbers = #tpu.dot_dimension_numbers<[1], [1], [0], [0], [0, 0, 1, 0], [], []>} : vector<8x8xf32>, vector<8x8xf32>, vector<8x8xf32> -> vector<8x8xf32>
      %154 = vector.broadcast %146 : i32 to vector<8x8xi32>
      %155 = arith.addi %154, %30 : vector<8x8xi32>
      %156 = arith.cmpi sge, %29, %155 : vector<8x8xi32>
      %cst_77 = arith.constant 0xFF800000 : f32
      %157 = vector.broadcast %cst_77 : f32 to vector<8x8xf32>
      %158 = arith.select %156, %153, %157 : vector<8x8xi1>, vector<8x8xf32>
      %cst_78 = arith.constant dense<0xFF800000> : vector<8xf32>
      %159 = vector.multi_reduction <maximumf>, %158, %cst_78 [1] : vector<8x8xf32> to vector<8xf32>
      %160 = vector.shape_cast %159 : vector<8xf32> to vector<8x1xf32>
      %161 = arith.maximumf %arg22, %160 : vector<8x1xf32>
      %162 = arith.subf %arg22, %161 : vector<8x1xf32>
      %163 = math.exp %162 : vector<8x1xf32>
      %164 = vector.broadcast %161 : vector<8x1xf32> to vector<8x8xf32>
      %165 = arith.subf %158, %164 : vector<8x8xf32>
      %166 = math.exp %165 : vector<8x8xf32>
      %167 = arith.mulf %163, %arg23 : vector<8x1xf32>
      %cst_79 = arith.constant dense<0.000000e+00> : vector<8xf32>
      %168 = vector.multi_reduction <add>, %166, %cst_79 [1] : vector<8x8xf32> to vector<8xf32>
      %169 = vector.shape_cast %168 : vector<8xf32> to vector<8x1xf32>
      %170 = arith.addf %167, %169 : vector<8x1xf32>
      %171 = vector.broadcast %163 : vector<8x1xf32> to vector<8x8xf32>
      %172 = arith.mulf %171, %arg24 : vector<8x8xf32>
      %cst_80 = arith.constant dense<0.000000e+00> : vector<8x8xf32>
      %173 = tpu.matmul %166, %152, %cst_80 {dimension_numbers = #tpu.dot_dimension_numbers<[1], [0], [0], [1], [0, 0, 1, 1], [], []>} : vector<8x8xf32>, vector<8x8xf32>, vector<8x8xf32> -> vector<8x8xf32>
      %174 = arith.addf %172, %173 : vector<8x8xf32>
      scf.yield %161, %170, %174 : vector<8x1xf32>, vector<8x1xf32>, vector<8x8xf32>
    }
    %39 = tpu.reciprocal %38#1 {approx = true} : vector<8x1xf32> -> vector<8x1xf32>
    %40 = arith.mulf %38#1, %39 : vector<8x1xf32>
    %cst_16 = arith.constant 2.000000e+00 : f32
    %41 = vector.broadcast %cst_16 : f32 to vector<8x1xf32>
    %42 = arith.subf %41, %40 : vector<8x1xf32>
    %43 = arith.mulf %39, %42 : vector<8x1xf32>
    %44 = vector.broadcast %43 : vector<8x1xf32> to vector<8x8xf32>
    %45 = arith.mulf %38#2, %44 : vector<8x8xf32>
    %c0_17 = arith.constant 0 : index
    %c0_18 = arith.constant 0 : index
    %46 = vector.load %arg20[%c0_17, %c0_18] : memref<8x32xf32, #tpu.memory_space<vmem>>, vector<8x8xf32>
    tpu.vector_store %arg20[%c0_17, %c0_18], %45 {strides = array<i32>} : memref<8x32xf32, #tpu.memory_space<vmem>>, vector<8x8xf32>,
    %47 = vector.extract_strided_slice %26 {offsets = [0, 8], sizes = [8, 8], strides = [1, 1]} : vector<8x32xf32> to vector<8x8xf32>
    %cst_19 = arith.constant 0xFF800000 : f32
    %48 = vector.broadcast %cst_19 : f32 to vector<8x1xf32>
    %cst_20 = arith.constant 0.000000e+00 : f32
    %49 = vector.broadcast %cst_20 : f32 to vector<8x1xf32>
    %cst_21 = arith.constant 0.000000e+00 : f32
    %50 = vector.broadcast %cst_21 : f32 to vector<8x8xf32>
    %c0_i32_22 = arith.constant 0 : i32
    %51 = arith.subi %31, %c0_i32_22 : i32
    %52 = arith.addi %c0_i32_22, %51 : i32
    %c1_i32_23 = arith.constant 1 : i32
    %53:3 = scf.for %arg21 = %c0_i32_22 to %52 step %c1_i32_23 iter_args(%arg22 = %48, %arg23 = %49, %arg24 = %50) -> (vector<8x1xf32>, vector<8x1xf32>, vector<8x8xf32>)  : i32 {
      %c8_i32_71 = arith.constant 8 : i32
      %145 = arith.muli %arg21, %c8_i32_71 : i32
      %146 = tpu.assume_multiple %145, 8 : i32
      %c1 = arith.constant 1 : index
      %147 = arith.index_cast %146 : i32 to index
      %c0_72 = arith.constant 0 : index
      %148 = vector.load %arg18[%c1, %147, %c0_72] : memref<2x8x8xf32, #tpu.memory_space<vmem>>, vector<1x8x8xf32>
      %149 = vector.shape_cast %148 : vector<1x8x8xf32> to vector<8x8xf32>
      %c1_73 = arith.constant 1 : index
      %150 = arith.index_cast %146 : i32 to index
      %c0_74 = arith.constant 0 : index
      %151 = vector.load %arg19[%c1_73, %150, %c0_74] : memref<2x8x8xf32, #tpu.memory_space<vmem>>, vector<1x8x8xf32>
      %152 = vector.shape_cast %151 : vector<1x8x8xf32> to vector<8x8xf32>
      %cst_75 = arith.constant dense<0.000000e+00> : vector<8x8xf32>
      %153 = tpu.matmul %47, %149, %cst_75 {dimension_numbers = #tpu.dot_dimension_numbers<[1], [1], [0], [0], [0, 0, 1, 0], [], []>} : vector<8x8xf32>, vector<8x8xf32>, vector<8x8xf32> -> vector<8x8xf32>
      %154 = vector.broadcast %146 : i32 to vector<8x8xi32>
      %155 = arith.addi %154, %30 : vector<8x8xi32>
      %156 = arith.cmpi sge, %29, %155 : vector<8x8xi32>
      %cst_76 = arith.constant 0xFF800000 : f32
      %157 = vector.broadcast %cst_76 : f32 to vector<8x8xf32>
      %158 = arith.select %156, %153, %157 : vector<8x8xi1>, vector<8x8xf32>
      %cst_77 = arith.constant dense<0xFF800000> : vector<8xf32>
      %159 = vector.multi_reduction <maximumf>, %158, %cst_77 [1] : vector<8x8xf32> to vector<8xf32>
      %160 = vector.shape_cast %159 : vector<8xf32> to vector<8x1xf32>
      %161 = arith.maximumf %arg22, %160 : vector<8x1xf32>
      %162 = arith.subf %arg22, %161 : vector<8x1xf32>
      %163 = math.exp %162 : vector<8x1xf32>
      %164 = vector.broadcast %161 : vector<8x1xf32> to vector<8x8xf32>
      %165 = arith.subf %158, %164 : vector<8x8xf32>
      %166 = math.exp %165 : vector<8x8xf32>
      %167 = arith.mulf %163, %arg23 : vector<8x1xf32>
      %cst_78 = arith.constant dense<0.000000e+00> : vector<8xf32>
      %168 = vector.multi_reduction <add>, %166, %cst_78 [1] : vector<8x8xf32> to vector<8xf32>
      %169 = vector.shape_cast %168 : vector<8xf32> to vector<8x1xf32>
      %170 = arith.addf %167, %169 : vector<8x1xf32>
      %171 = vector.broadcast %163 : vector<8x1xf32> to vector<8x8xf32>
      %172 = arith.mulf %171, %arg24 : vector<8x8xf32>
      %cst_79 = arith.constant dense<0.000000e+00> : vector<8x8xf32>
      %173 = tpu.matmul %166, %152, %cst_79 {dimension_numbers = #tpu.dot_dimension_numbers<[1], [0], [0], [1], [0, 0, 1, 1], [], []>} : vector<8x8xf32>, vector<8x8xf32>, vector<8x8xf32> -> vector<8x8xf32>
      %174 = arith.addf %172, %173 : vector<8x8xf32>
      scf.yield %161, %170, %174 : vector<8x1xf32>, vector<8x1xf32>, vector<8x8xf32>
    }
    %54 = tpu.reciprocal %53#1 {approx = true} : vector<8x1xf32> -> vector<8x1xf32>
    %55 = arith.mulf %53#1, %54 : vector<8x1xf32>
    %cst_24 = arith.constant 2.000000e+00 : f32
    %56 = vector.broadcast %cst_24 : f32 to vector<8x1xf32>
    %57 = arith.subf %56, %55 : vector<8x1xf32>
    %58 = arith.mulf %54, %57 : vector<8x1xf32>
    %59 = vector.broadcast %58 : vector<8x1xf32> to vector<8x8xf32>
    %60 = arith.mulf %53#2, %59 : vector<8x8xf32>
    %c0_25 = arith.constant 0 : index
    %c8 = arith.constant 8 : index
    %61 = vector.load %arg20[%c0_25, %c8] : memref<8x32xf32, #tpu.memory_space<vmem>>, vector<8x8xf32>
    tpu.vector_store %arg20[%c0_25, %c8], %60 {strides = array<i32>} : memref<8x32xf32, #tpu.memory_space<vmem>>, vector<8x8xf32>,
    %62 = vector.extract_strided_slice %26 {offsets = [0, 16], sizes = [8, 8], strides = [1, 1]} : vector<8x32xf32> to vector<8x8xf32>
    %cst_26 = arith.constant 0xFF800000 : f32
    %63 = vector.broadcast %cst_26 : f32 to vector<8x1xf32>
    %cst_27 = arith.constant 0.000000e+00 : f32
    %64 = vector.broadcast %cst_27 : f32 to vector<8x1xf32>
    %cst_28 = arith.constant 0.000000e+00 : f32
    %65 = vector.broadcast %cst_28 : f32 to vector<8x8xf32>
    %c0_i32_29 = arith.constant 0 : i32
    %66 = arith.subi %31, %c0_i32_29 : i32
    %67 = arith.addi %c0_i32_29, %66 : i32
    %c1_i32_30 = arith.constant 1 : i32
    %68:3 = scf.for %arg21 = %c0_i32_29 to %67 step %c1_i32_30 iter_args(%arg22 = %63, %arg23 = %64, %arg24 = %65) -> (vector<8x1xf32>, vector<8x1xf32>, vector<8x8xf32>)  : i32 {
      %c8_i32_71 = arith.constant 8 : i32
      %145 = arith.muli %arg21, %c8_i32_71 : i32
      %146 = tpu.assume_multiple %145, 8 : i32
      %c0_72 = arith.constant 0 : index
      %147 = arith.index_cast %146 : i32 to index
      %c0_73 = arith.constant 0 : index
      %148 = vector.load %arg18[%c0_72, %147, %c0_73] : memref<2x8x8xf32, #tpu.memory_space<vmem>>, vector<1x8x8xf32>
      %149 = vector.shape_cast %148 : vector<1x8x8xf32> to vector<8x8xf32>
      %c0_74 = arith.constant 0 : index
      %150 = arith.index_cast %146 : i32 to index
      %c0_75 = arith.constant 0 : index
      %151 = vector.load %arg19[%c0_74, %150, %c0_75] : memref<2x8x8xf32, #tpu.memory_space<vmem>>, vector<1x8x8xf32>
      %152 = vector.shape_cast %151 : vector<1x8x8xf32> to vector<8x8xf32>
      %cst_76 = arith.constant dense<0.000000e+00> : vector<8x8xf32>
      %153 = tpu.matmul %62, %149, %cst_76 {dimension_numbers = #tpu.dot_dimension_numbers<[1], [1], [0], [0], [0, 0, 1, 0], [], []>} : vector<8x8xf32>, vector<8x8xf32>, vector<8x8xf32> -> vector<8x8xf32>
      %154 = vector.broadcast %146 : i32 to vector<8x8xi32>
      %155 = arith.addi %154, %30 : vector<8x8xi32>
      %156 = arith.cmpi sge, %29, %155 : vector<8x8xi32>
      %cst_77 = arith.constant 0xFF800000 : f32
      %157 = vector.broadcast %cst_77 : f32 to vector<8x8xf32>
      %158 = arith.select %156, %153, %157 : vector<8x8xi1>, vector<8x8xf32>
      %cst_78 = arith.constant dense<0xFF800000> : vector<8xf32>
      %159 = vector.multi_reduction <maximumf>, %158, %cst_78 [1] : vector<8x8xf32> to vector<8xf32>
      %160 = vector.shape_cast %159 : vector<8xf32> to vector<8x1xf32>
      %161 = arith.maximumf %arg22, %160 : vector<8x1xf32>
      %162 = arith.subf %arg22, %161 : vector<8x1xf32>
      %163 = math.exp %162 : vector<8x1xf32>
      %164 = vector.broadcast %161 : vector<8x1xf32> to vector<8x8xf32>
      %165 = arith.subf %158, %164 : vector<8x8xf32>
      %166 = math.exp %165 : vector<8x8xf32>
      %167 = arith.mulf %163, %arg23 : vector<8x1xf32>
      %cst_79 = arith.constant dense<0.000000e+00> : vector<8xf32>
      %168 = vector.multi_reduction <add>, %166, %cst_79 [1] : vector<8x8xf32> to vector<8xf32>
      %169 = vector.shape_cast %168 : vector<8xf32> to vector<8x1xf32>
      %170 = arith.addf %167, %169 : vector<8x1xf32>
      %171 = vector.broadcast %163 : vector<8x1xf32> to vector<8x8xf32>
      %172 = arith.mulf %171, %arg24 : vector<8x8xf32>
      %cst_80 = arith.constant dense<0.000000e+00> : vector<8x8xf32>
      %173 = tpu.matmul %166, %152, %cst_80 {dimension_numbers = #tpu.dot_dimension_numbers<[1], [0], [0], [1], [0, 0, 1, 1], [], []>} : vector<8x8xf32>, vector<8x8xf32>, vector<8x8xf32> -> vector<8x8xf32>
      %174 = arith.addf %172, %173 : vector<8x8xf32>
      scf.yield %161, %170, %174 : vector<8x1xf32>, vector<8x1xf32>, vector<8x8xf32>
    }
    %69 = tpu.reciprocal %68#1 {approx = true} : vector<8x1xf32> -> vector<8x1xf32>
    %70 = arith.mulf %68#1, %69 : vector<8x1xf32>
    %cst_31 = arith.constant 2.000000e+00 : f32
    %71 = vector.broadcast %cst_31 : f32 to vector<8x1xf32>
    %72 = arith.subf %71, %70 : vector<8x1xf32>
    %73 = arith.mulf %69, %72 : vector<8x1xf32>
    %74 = vector.broadcast %73 : vector<8x1xf32> to vector<8x8xf32>
    %75 = arith.mulf %68#2, %74 : vector<8x8xf32>
    %c0_32 = arith.constant 0 : index
    %c16 = arith.constant 16 : index
    %76 = vector.load %arg20[%c0_32, %c16] : memref<8x32xf32, #tpu.memory_space<vmem>>, vector<8x8xf32>
    tpu.vector_store %arg20[%c0_32, %c16], %75 {strides = array<i32>} : memref<8x32xf32, #tpu.memory_space<vmem>>, vector<8x8xf32>,
    %77 = vector.extract_strided_slice %26 {offsets = [0, 24], sizes = [8, 8], strides = [1, 1]} : vector<8x32xf32> to vector<8x8xf32>
    %cst_33 = arith.constant 0xFF800000 : f32
    %78 = vector.broadcast %cst_33 : f32 to vector<8x1xf32>
    %cst_34 = arith.constant 0.000000e+00 : f32
    %79 = vector.broadcast %cst_34 : f32 to vector<8x1xf32>
    %cst_35 = arith.constant 0.000000e+00 : f32
    %80 = vector.broadcast %cst_35 : f32 to vector<8x8xf32>
    %c0_i32_36 = arith.constant 0 : i32
    %81 = arith.subi %31, %c0_i32_36 : i32
    %82 = arith.addi %c0_i32_36, %81 : i32
    %c1_i32_37 = arith.constant 1 : i32
    %83:3 = scf.for %arg21 = %c0_i32_36 to %82 step %c1_i32_37 iter_args(%arg22 = %78, %arg23 = %79, %arg24 = %80) -> (vector<8x1xf32>, vector<8x1xf32>, vector<8x8xf32>)  : i32 {
      %c8_i32_71 = arith.constant 8 : i32
      %145 = arith.muli %arg21, %c8_i32_71 : i32
      %146 = tpu.assume_multiple %145, 8 : i32
      %c1 = arith.constant 1 : index
      %147 = arith.index_cast %146 : i32 to index
      %c0_72 = arith.constant 0 : index
      %148 = vector.load %arg18[%c1, %147, %c0_72] : memref<2x8x8xf32, #tpu.memory_space<vmem>>, vector<1x8x8xf32>
      %149 = vector.shape_cast %148 : vector<1x8x8xf32> to vector<8x8xf32>
      %c1_73 = arith.constant 1 : index
      %150 = arith.index_cast %146 : i32 to index
      %c0_74 = arith.constant 0 : index
      %151 = vector.load %arg19[%c1_73, %150, %c0_74] : memref<2x8x8xf32, #tpu.memory_space<vmem>>, vector<1x8x8xf32>
      %152 = vector.shape_cast %151 : vector<1x8x8xf32> to vector<8x8xf32>
      %cst_75 = arith.constant dense<0.000000e+00> : vector<8x8xf32>
      %153 = tpu.matmul %77, %149, %cst_75 {dimension_numbers = #tpu.dot_dimension_numbers<[1], [1], [0], [0], [0, 0, 1, 0], [], []>} : vector<8x8xf32>, vector<8x8xf32>, vector<8x8xf32> -> vector<8x8xf32>
      %154 = vector.broadcast %146 : i32 to vector<8x8xi32>
      %155 = arith.addi %154, %30 : vector<8x8xi32>
      %156 = arith.cmpi sge, %29, %155 : vector<8x8xi32>
      %cst_76 = arith.constant 0xFF800000 : f32
      %157 = vector.broadcast %cst_76 : f32 to vector<8x8xf32>
      %158 = arith.select %156, %153, %157 : vector<8x8xi1>, vector<8x8xf32>
      %cst_77 = arith.constant dense<0xFF800000> : vector<8xf32>
      %159 = vector.multi_reduction <maximumf>, %158, %cst_77 [1] : vector<8x8xf32> to vector<8xf32>
      %160 = vector.shape_cast %159 : vector<8xf32> to vector<8x1xf32>
      %161 = arith.maximumf %arg22, %160 : vector<8x1xf32>
      %162 = arith.subf %arg22, %161 : vector<8x1xf32>
      %163 = math.exp %162 : vector<8x1xf32>
      %164 = vector.broadcast %161 : vector<8x1xf32> to vector<8x8xf32>
      %165 = arith.subf %158, %164 : vector<8x8xf32>
      %166 = math.exp %165 : vector<8x8xf32>
      %167 = arith.mulf %163, %arg23 : vector<8x1xf32>
      %cst_78 = arith.constant dense<0.000000e+00> : vector<8xf32>
      %168 = vector.multi_reduction <add>, %166, %cst_78 [1] : vector<8x8xf32> to vector<8xf32>
      %169 = vector.shape_cast %168 : vector<8xf32> to vector<8x1xf32>
      %170 = arith.addf %167, %169 : vector<8x1xf32>
      %171 = vector.broadcast %163 : vector<8x1xf32> to vector<8x8xf32>
      %172 = arith.mulf %171, %arg24 : vector<8x8xf32>
      %cst_79 = arith.constant dense<0.000000e+00> : vector<8x8xf32>
      %173 = tpu.matmul %166, %152, %cst_79 {dimension_numbers = #tpu.dot_dimension_numbers<[1], [0], [0], [1], [0, 0, 1, 1], [], []>} : vector<8x8xf32>, vector<8x8xf32>, vector<8x8xf32> -> vector<8x8xf32>
      %174 = arith.addf %172, %173 : vector<8x8xf32>
      scf.yield %161, %170, %174 : vector<8x1xf32>, vector<8x1xf32>, vector<8x8xf32>
    }
    %84 = tpu.reciprocal %83#1 {approx = true} : vector<8x1xf32> -> vector<8x1xf32>
    %85 = arith.mulf %83#1, %84 : vector<8x1xf32>
    %cst_38 = arith.constant 2.000000e+00 : f32
    %86 = vector.broadcast %cst_38 : f32 to vector<8x1xf32>
    %87 = arith.subf %86, %85 : vector<8x1xf32>
    %88 = arith.mulf %84, %87 : vector<8x1xf32>
    %89 = vector.broadcast %88 : vector<8x1xf32> to vector<8x8xf32>
    %90 = arith.mulf %83#2, %89 : vector<8x8xf32>
    %c0_39 = arith.constant 0 : index
    %c24 = arith.constant 24 : index
    %91 = vector.load %arg20[%c0_39, %c24] : memref<8x32xf32, #tpu.memory_space<vmem>>, vector<8x8xf32>
    tpu.vector_store %arg20[%c0_39, %c24], %90 {strides = array<i32>} : memref<8x32xf32, #tpu.memory_space<vmem>>, vector<8x8xf32>,
    %c0_40 = arith.constant 0 : index
    %c0_41 = arith.constant 0 : index
    %92 = vector.load %arg20[%c0_40, %c0_41] : memref<8x32xf32, #tpu.memory_space<vmem>>, vector<8x32xf32>
    %c0_42 = arith.constant 0 : index
    %c0_43 = arith.constant 0 : index
    %93 = vector.load %arg6[%c0_42, %c0_43] : memref<32x32xf32, #tpu.memory_space<vmem>>, vector<32x32xf32>
    %cst_44 = arith.constant dense<0.000000e+00> : vector<8x32xf32>
    %94 = tpu.matmul %92, %93, %cst_44 {dimension_numbers = #tpu.dot_dimension_numbers<[1], [0], [0], [1], [0, 0, 1, 1], [], []>} : vector<8x32xf32>, vector<32x32xf32>, vector<8x32xf32> -> vector<8x32xf32>
    %95 = arith.addf %9, %94 : vector<8x32xf32>
    %c0_45 = arith.constant 0 : index
    %c0_46 = arith.constant 0 : index
    %96 = vector.load %arg16[%c0_45, %c0_46] : memref<1x32xf32, #tpu.memory_space<vmem>>, vector<1x32xf32>
    %97 = vector.shape_cast %96 : vector<1x32xf32> to vector<32xf32>
    %98 = arith.mulf %95, %95 : vector<8x32xf32>
    %cst_47 = arith.constant dense<0.000000e+00> : vector<8xf32>
    %99 = vector.multi_reduction <add>, %98, %cst_47 [1] : vector<8x32xf32> to vector<8xf32>
    %100 = vector.shape_cast %99 : vector<8xf32> to vector<8x1xf32>
    %cst_48 = arith.constant 3.200000e+01 : f32
    %101 = vector.broadcast %cst_48 : f32 to vector<8x1xf32>
    %102 = arith.divf %100, %101 : vector<8x1xf32>
    %cst_49 = arith.constant 1.1920929E-7 : f32
    %103 = vector.broadcast %cst_49 : f32 to vector<8x1xf32>
    %104 = arith.addf %102, %103 : vector<8x1xf32>
    %105 = math.rsqrt %104 : vector<8x1xf32>
    %106 = vector.broadcast %105 : vector<8x1xf32> to vector<8x32xf32>
    %107 = arith.mulf %95, %106 : vector<8x32xf32>
    %108 = vector.shape_cast %97 : vector<32xf32> to vector<1x32xf32>
    %109 = vector.broadcast %108 : vector<1x32xf32> to vector<8x32xf32>
    %110 = arith.mulf %107, %109 : vector<8x32xf32>
    %c0_50 = arith.constant 0 : index
    %c0_51 = arith.constant 0 : index
    %111 = vector.load %arg10[%c0_50, %c0_51] : memref<32x64xf32, #tpu.memory_space<vmem>>, vector<32x64xf32>
    %cst_52 = arith.constant dense<0.000000e+00> : vector<8x64xf32>
    %112 = tpu.matmul %110, %111, %cst_52 {dimension_numbers = #tpu.dot_dimension_numbers<[1], [0], [0], [1], [0, 0, 1, 1], [], []>} : vector<8x32xf32>, vector<32x64xf32>, vector<8x64xf32> -> vector<8x64xf32>
    %c0_53 = arith.constant 0 : index
    %c0_54 = arith.constant 0 : index
    %113 = vector.load %arg11[%c0_53, %c0_54] : memref<1x64xf32, #tpu.memory_space<vmem>>, vector<1x64xf32>
    %114 = vector.shape_cast %113 : vector<1x64xf32> to vector<64xf32>
    %115 = vector.shape_cast %114 : vector<64xf32> to vector<1x64xf32>
    %116 = vector.broadcast %115 : vector<1x64xf32> to vector<8x64xf32>
    %117 = arith.addf %112, %116 : vector<8x64xf32>
    %c0_55 = arith.constant 0 : index
    %c0_56 = arith.constant 0 : index
    %118 = vector.load %arg12[%c0_55, %c0_56] : memref<32x64xf32, #tpu.memory_space<vmem>>, vector<32x64xf32>
    %cst_57 = arith.constant dense<0.000000e+00> : vector<8x64xf32>
    %119 = tpu.matmul %110, %118, %cst_57 {dimension_numbers = #tpu.dot_dimension_numbers<[1], [0], [0], [1], [0, 0, 1, 1], [], []>} : vector<8x32xf32>, vector<32x64xf32>, vector<8x64xf32> -> vector<8x64xf32>
    %c0_58 = arith.constant 0 : index
    %c0_59 = arith.constant 0 : index
    %120 = vector.load %arg13[%c0_58, %c0_59] : memref<1x64xf32, #tpu.memory_space<vmem>>, vector<1x64xf32>
    %121 = vector.shape_cast %120 : vector<1x64xf32> to vector<64xf32>
    %122 = vector.shape_cast %121 : vector<64xf32> to vector<1x64xf32>
    %123 = vector.broadcast %122 : vector<1x64xf32> to vector<8x64xf32>
    %124 = arith.addf %119, %123 : vector<8x64xf32>
    %125 = arith.mulf %117, %124 : vector<8x64xf32>
    %cst_60 = arith.constant 5.000000e-01 : f32
    %126 = vector.broadcast %cst_60 : f32 to vector<8x64xf32>
    %127 = arith.mulf %126, %125 : vector<8x64xf32>
    %cst_61 = arith.constant 0.707106769 : f32
    %128 = vector.broadcast %cst_61 : f32 to vector<8x64xf32>
    %129 = arith.mulf %125, %128 : vector<8x64xf32>
    %130 = math.erf %129 : vector<8x64xf32>
    %cst_62 = arith.constant 1.000000e+00 : f32
    %131 = vector.broadcast %cst_62 : f32 to vector<8x64xf32>
    %132 = arith.addf %131, %130 : vector<8x64xf32>
    %133 = arith.mulf %127, %132 : vector<8x64xf32>
    %c0_63 = arith.constant 0 : index
    %c0_64 = arith.constant 0 : index
    %134 = vector.load %arg14[%c0_63, %c0_64] : memref<64x32xf32, #tpu.memory_space<vmem>>, vector<64x32xf32>
    %cst_65 = arith.constant dense<0.000000e+00> : vector<8x32xf32>
    %135 = tpu.matmul %133, %134, %cst_65 {dimension_numbers = #tpu.dot_dimension_numbers<[1], [0], [0], [1], [0, 0, 1, 1], [], []>} : vector<8x64xf32>, vector<64x32xf32>, vector<8x32xf32> -> vector<8x32xf32>
    %c0_66 = arith.constant 0 : index
    %c0_67 = arith.constant 0 : index
    %136 = vector.load %arg15[%c0_66, %c0_67] : memref<1x32xf32, #tpu.memory_space<vmem>>, vector<1x32xf32>
    %137 = vector.shape_cast %136 : vector<1x32xf32> to vector<32xf32>
    %138 = vector.shape_cast %137 : vector<32xf32> to vector<1x32xf32>
    %139 = vector.broadcast %138 : vector<1x32xf32> to vector<8x32xf32>
    %140 = arith.addf %135, %139 : vector<8x32xf32>
    %141 = arith.addf %95, %140 : vector<8x32xf32>
    %c0_68 = arith.constant 0 : index
    %c0_69 = arith.constant 0 : index
    %c0_70 = arith.constant 0 : index
    %142 = vector.load %arg17[%c0_68, %c0_69, %c0_70] : memref<1x8x32xf32, #tpu.memory_space<vmem>>, vector<1x8x32xf32>
    %143 = vector.shape_cast %142 : vector<1x8x32xf32> to vector<8x32xf32>
    %144 = vector.shape_cast %141 : vector<8x32xf32> to vector<1x8x32xf32>
    tpu.vector_store %arg17[%c0_68, %c0_69, %c0_70], %144 {strides = array<i32>} : memref<1x8x32xf32, #tpu.memory_space<vmem>>, vector<1x8x32xf32>,
    return
  }
  func.func @transform_0(%arg0: i32, %arg1: i32) -> (i32, i32, i32) {
    %c0_i32 = arith.constant 0 : i32
    %c0_i32_0 = arith.constant 0 : i32
    %c0_i32_1 = arith.constant 0 : i32
    return %arg0, %c0_i32, %c0_i32_0 : i32, i32, i32
  }
  func.func @transform_1(%arg0: i32, %arg1: i32) -> (i32, i32) {
    %c0_i32 = arith.constant 0 : i32
    %c0_i32_0 = arith.constant 0 : i32
    %c0_i32_1 = arith.constant 0 : i32
    return %c0_i32, %c0_i32_0 : i32, i32
  }
  func.func @transform_2(%arg0: i32, %arg1: i32) -> (i32, i32) {
    %c0_i32 = arith.constant 0 : i32
    %c0_i32_0 = arith.constant 0 : i32
    %c0_i32_1 = arith.constant 0 : i32
    return %c0_i32, %c0_i32_0 : i32, i32
  }
  func.func @transform_3(%arg0: i32, %arg1: i32) -> (i32, i32) {
    %c0_i32 = arith.constant 0 : i32
    %c0_i32_0 = arith.constant 0 : i32
    %c0_i32_1 = arith.constant 0 : i32
    return %c0_i32, %c0_i32_0 : i32, i32
  }
  func.func @transform_4(%arg0: i32, %arg1: i32) -> (i32, i32) {
    %c0_i32 = arith.constant 0 : i32
    %c0_i32_0 = arith.constant 0 : i32
    %c0_i32_1 = arith.constant 0 : i32
    return %c0_i32, %c0_i32_0 : i32, i32
  }
  func.func @transform_5(%arg0: i32, %arg1: i32) -> (i32, i32) {
    %c0_i32 = arith.constant 0 : i32
    %c0_i32_0 = arith.constant 0 : i32
    %c0_i32_1 = arith.constant 0 : i32
    return %c0_i32, %c0_i32_0 : i32, i32
  }
  func.func @transform_6(%arg0: i32, %arg1: i32) -> (i32, i32) {
    %c0_i32 = arith.constant 0 : i32
    %c0_i32_0 = arith.constant 0 : i32
    return %arg1, %c0_i32 : i32, i32
  }
  func.func @transform_7(%arg0: i32, %arg1: i32) -> (i32, i32) {
    %c0_i32 = arith.constant 0 : i32
    %c0_i32_0 = arith.constant 0 : i32
    %c0_i32_1 = arith.constant 0 : i32
    return %c0_i32, %c0_i32_0 : i32, i32
  }
  func.func @transform_8(%arg0: i32, %arg1: i32) -> (i32, i32) {
    %c0_i32 = arith.constant 0 : i32
    %c0_i32_0 = arith.constant 0 : i32
    %c0_i32_1 = arith.constant 0 : i32
    return %c0_i32, %c0_i32_0 : i32, i32
  }
  func.func @transform_9(%arg0: i32, %arg1: i32) -> (i32, i32) {
    %c0_i32 = arith.constant 0 : i32
    %c0_i32_0 = arith.constant 0 : i32
    %c0_i32_1 = arith.constant 0 : i32
    return %c0_i32, %c0_i32_0 : i32, i32
  }
  func.func @transform_10(%arg0: i32, %arg1: i32) -> (i32, i32) {
    %c0_i32 = arith.constant 0 : i32
    %c0_i32_0 = arith.constant 0 : i32
    %c0_i32_1 = arith.constant 0 : i32
    return %c0_i32, %c0_i32_0 : i32, i32
  }
  func.func @transform_11(%arg0: i32, %arg1: i32) -> (i32, i32) {
    %c0_i32 = arith.constant 0 : i32
    %c0_i32_0 = arith.constant 0 : i32
    %c0_i32_1 = arith.constant 0 : i32
    return %c0_i32, %c0_i32_0 : i32, i32
  }
  func.func @transform_12(%arg0: i32, %arg1: i32) -> (i32, i32) {
    %c0_i32 = arith.constant 0 : i32
    %c0_i32_0 = arith.constant 0 : i32
    %c0_i32_1 = arith.constant 0 : i32
    return %c0_i32, %c0_i32_0 : i32, i32
  }
  func.func @transform_13(%arg0: i32, %arg1: i32) -> (i32, i32) {
    %c0_i32 = arith.constant 0 : i32
    %c0_i32_0 = arith.constant 0 : i32
    %c0_i32_1 = arith.constant 0 : i32
    return %c0_i32, %c0_i32_0 : i32, i32
  }
  func.func @transform_14(%arg0: i32, %arg1: i32) -> (i32, i32) {
    %c0_i32 = arith.constant 0 : i32
    %c0_i32_0 = arith.constant 0 : i32
    %c0_i32_1 = arith.constant 0 : i32
    return %c0_i32, %c0_i32_0 : i32, i32
  }
  func.func @transform_15(%arg0: i32, %arg1: i32) -> (i32, i32, i32) {
    %c0_i32 = arith.constant 0 : i32
    %c0_i32_0 = arith.constant 0 : i32
    return %arg0, %arg1, %c0_i32 : i32, i32, i32
  }
}

</mosaic_0001>

<llo_original>
// kernel: tpu_custom_call.1
$region0: #{tpu_custom_call.1}
  #allocation0 [shape = 'u32[]', space=smem, size = 0x4, offset = 0x4, fixed_abs, tag = 'smem constant byte address 0x4 - core index']
  #allocation1 [shape = 'u32[144,128]{1,0:T(1,128)}', space=vmem, size = 0x12000, scoped, tag = 'internal scratch']
  #allocation2 [shape = 'f32[2,8,8]{2,1,0:T(8,128)}', space=vmem, size = 0x2000, scoped, tag = 'scratch operand']
  #allocation3 [shape = 'f32[2,8,8]{2,1,0:T(8,128)}', space=vmem, size = 0x2000, scoped, tag = 'scratch operand']
  #allocation4 [shape = 'f32[8,32]{1,0:T(8,128)}', space=vmem, size = 0x1000, scoped, tag = 'scratch operand']
  %s0 = inlined_call_operand.vmem [shape: f32[2,8,32], index: 0, kind: input, shape index: {}]
  %s1 = inlined_call_operand.vmem [shape: f32[32,32], index: 1, kind: input, shape index: {}]
  %s2 = inlined_call_operand.vmem [shape: f32[32,16], index: 2, kind: input, shape index: {}]
  %s3 = inlined_call_operand.vmem [shape: f32[32,16], index: 3, kind: input, shape index: {}]
  %s4 = inlined_call_operand.vmem [shape: f32[32,32], index: 4, kind: input, shape index: {}]
  %s5 = inlined_call_operand.vmem [shape: f32[1,32], index: 5, kind: input, shape index: {}]
  %s6 = inlined_call_operand.vmem [shape: f32[8,32], index: 6, kind: input, shape index: {}]
  %s7 = inlined_call_operand.hbm [shape: f32[8,8], index: 7, kind: input, shape index: {}]
  %s8 = inlined_call_operand.vmem [shape: f32[32,64], index: 8, kind: input, shape index: {}]
  %s9 = inlined_call_operand.vmem [shape: f32[1,64], index: 9, kind: input, shape index: {}]
  %s10 = inlined_call_operand.vmem [shape: f32[32,64], index: 10, kind: input, shape index: {}]
  %s11 = inlined_call_operand.vmem [shape: f32[1,64], index: 11, kind: input, shape index: {}]
  %s12 = inlined_call_operand.vmem [shape: f32[64,32], index: 12, kind: input, shape index: {}]
  %s13 = inlined_call_operand.vmem [shape: f32[1,32], index: 13, kind: input, shape index: {}]
  %s14 = inlined_call_operand.vmem [shape: f32[1,32], index: 14, kind: input, shape index: {}]
  %s15 = inlined_call_operand.hbm [shape: f32[2,8,32], index: 15, kind: output, shape index: {}]
  %s16 = sld [smem:[#allocation0]]
  $region129: #{tpu_custom_call.1} parent=0
    _
  %s18 = ssub.s32 1, %s16
  %s19 = scalar_select 0, %s18, %s16
  $region1: #{tpu_custom_call.1} parent=0
    #allocation5 [shape = 'u8[4096]{0}', space=vmem, size = 0x1000, scoped, tag = 'input window, operand 7, single buffered']
    #allocation6 [shape = 's32[2]{0}', space=sflag, size = 0x8, scoped, tag = 'scoped memory for tpu_custom_call.1']
    #allocation7 [shape = 's32[2]{0}', space=sflag, size = 0x8, scoped, tag = 'scoped memory for tpu_custom_call.1']
    #allocation8 [shape = 'u8[8192]{0}', space=vmem, size = 0x2000, scoped, tag = 'output window, operand 0']
    %20 = vsyncpa [#allocation6], 0
    %21 = vsyncpa [#allocation7], 0
    %s22 = scalar_lea.sflag [#allocation7], 1
    %23 = vsyncpa %s22, 0
    loop: start=0, step=1, limit=4
    $region2: #{tpu_custom_call.1} parent=1 // loop_pre_header
      _
    $region3: #{tpu_custom_call.1} parent=1 // loop_header
      %s25 = sphi 0, %s29
      %p26 = scmp.ge.s32.totalorder %s25, 4
      %s32 = sphi 0, %s44
      %s33 = sphi 0, %s40
      %s34 = sphi 0, %s32
      %s35 = sphi 0, %s33
      %s36 = sphi 0, %s34
      %s37 = sphi 0, %s35
      %s47 = sphi 0, %s49
      %s50 = sphi 0, %s47
      %s51 = sphi 0, %s50
      %s67 = sphi 0, %s51
      %s71 = sphi 0, %s71
      %s73 = sphi 0, %s71
      %s74 = sphi 0, %s73
      %s88 = sphi 0, %s74
      %s92 = sphi 0, %s92
      %s94 = sphi 0, %s92
      %s95 = sphi 0, %s94
      %s109 = sphi 0, %s95
      %s113 = sphi 0, %s113
      %s115 = sphi 0, %s113
      %s116 = sphi 0, %s115
      %s130 = sphi 0, %s116
      %s134 = sphi 0, %s134
      %s136 = sphi 0, %s134
      %s137 = sphi 0, %s136
      %s151 = sphi 0, %s137
      %s155 = sphi 0, %s155
      %s157 = sphi 0, %s155
      %s158 = sphi 0, %s157
      %s172 = sphi 0, %s158
      %s178 = sphi 0, %s180
      %s181 = sphi 0, %s178
      %s182 = sphi 0, %s181
      %s198 = sphi 0, %s182
      %s202 = sphi 0, %s202
      %s204 = sphi 0, %s202
      %s205 = sphi 0, %s204
      %s219 = sphi 0, %s205
      %s223 = sphi 0, %s223
      %s225 = sphi 0, %s223
      %s226 = sphi 0, %s225
      %s240 = sphi 0, %s226
      %s244 = sphi 0, %s244
      %s246 = sphi 0, %s244
      %s247 = sphi 0, %s246
      %s261 = sphi 0, %s247
      %s265 = sphi 0, %s265
      %s267 = sphi 0, %s265
      %s268 = sphi 0, %s267
      %s282 = sphi 0, %s268
      %s286 = sphi 0, %s286
      %s288 = sphi 0, %s286
      %s289 = sphi 0, %s288
      %s303 = sphi 0, %s289
      %s307 = sphi 0, %s307
      %s309 = sphi 0, %s307
      %s310 = sphi 0, %s309
      %s324 = sphi 0, %s310
      %s328 = sphi 0, %s328
      %s330 = sphi 0, %s328
      %s331 = sphi 0, %s330
      %s345 = sphi 0, %s331
      %s349 = sphi 0, %s349
      %s351 = sphi 0, %s349
      %s352 = sphi 0, %s351
      %s366 = sphi 0, %s352
      %s374 = sphi 0, %s376
      %s377 = sphi 0, %s374
      %s378 = sphi 0, %s377
      %s394 = sphi 0, %s378
    $region4: #{tpu_custom_call.1} parent=1 // loop_header_branch
      %28 = sbr.rel (%p26) target = $region8
    $region5: #{tpu_custom_call.1} parent=1 // loop_body
      %s30 = ssub.s32 %s25, 1
      %s31 = ssub.s32 %s25, 2
      %s38 = sadd.s32 1, %s33
      %p39 = scmp.ge.s32.totalorder %s38, 1
      %s40 = scalar_select %p39, 0, %s38
      %s41 = sadd.s32 1, %s32
      %s42 = scalar_select %p39, %s41, %s32
      %p43 = scmp.ge.s32.totalorder %s42, 2
      %s44 = scalar_select %p43, 0, %s42
      %s45 = ssub.s32 %s32, %s44
      %p46 = scmp.eq.s32.totalorder %s45, 0
      %s48 = sadd.s32 %s47, 1
      %s49 = scalar_select %p46, %s47, %s48
      %p52 = pneg %p46
      %p53 = scmp.eq.s32.totalorder %s25, 1
      %p54 = por %p52, %p53
      %p55 = scmp.ne.s32.totalorder %s47, %s50
      %p56 = scmp.eq.s32.totalorder %s25, 0
      %p57 = por %p55, %p56
      %p58 = scmp.ne.s32.totalorder %s47, %s50
      %p59 = scmp.eq.s32.totalorder %s30, 1
      %p60 = por %p58, %p59
      %p61 = scmp.ne.s32.totalorder %s50, %s51
      %p62 = scmp.eq.s32.totalorder %s30, 0
      %p63 = por %p61, %p62
      %p64 = scmp.ne.s32.totalorder %s50, %s51
      %p65 = scmp.eq.s32.totalorder %s31, 1
      %p66 = por %p64, %p65
      %p68 = scmp.ne.s32.totalorder %s51, %s67
      %p69 = scmp.eq.s32.totalorder %s31, 0
      %p70 = por %p68, %p69
      %s72 = sadd.s32 %s71, 1
      %p75 = scmp.eq.s32.totalorder %s25, 1
      %p76 = scmp.ne.s32.totalorder %s71, %s73
      %p77 = scmp.eq.s32.totalorder %s25, 0
      %p78 = por %p76, %p77
      %p79 = scmp.ne.s32.totalorder %s71, %s73
      %p80 = scmp.eq.s32.totalorder %s30, 1
      %p81 = por %p79, %p80
      %p82 = scmp.ne.s32.totalorder %s73, %s74
      %p83 = scmp.eq.s32.totalorder %s30, 0
      %p84 = por %p82, %p83
      %p85 = scmp.ne.s32.totalorder %s73, %s74
      %p86 = scmp.eq.s32.totalorder %s31, 1
      %p87 = por %p85, %p86
      %p89 = scmp.ne.s32.totalorder %s74, %s88
      %p90 = scmp.eq.s32.totalorder %s31, 0
      %p91 = por %p89, %p90
      %s93 = sadd.s32 %s92, 1
      %p96 = scmp.eq.s32.totalorder %s25, 1
      %p97 = scmp.ne.s32.totalorder %s92, %s94
      %p98 = scmp.eq.s32.totalorder %s25, 0
      %p99 = por %p97, %p98
      %p100 = scmp.ne.s32.totalorder %s92, %s94
      %p101 = scmp.eq.s32.totalorder %s30, 1
      %p102 = por %p100, %p101
      %p103 = scmp.ne.s32.totalorder %s94, %s95
      %p104 = scmp.eq.s32.totalorder %s30, 0
      %p105 = por %p103, %p104
      %p106 = scmp.ne.s32.totalorder %s94, %s95
      %p107 = scmp.eq.s32.totalorder %s31, 1
      %p108 = por %p106, %p107
      %p110 = scmp.ne.s32.totalorder %s95, %s109
      %p111 = scmp.eq.s32.totalorder %s31, 0
      %p112 = por %p110, %p111
      %s114 = sadd.s32 %s113, 1
      %p117 = scmp.eq.s32.totalorder %s25, 1
      %p118 = scmp.ne.s32.totalorder %s113, %s115
      %p119 = scmp.eq.s32.totalorder %s25, 0
      %p120 = por %p118, %p119
      %p121 = scmp.ne.s32.totalorder %s113, %s115
      %p122 = scmp.eq.s32.totalorder %s30, 1
      %p123 = por %p121, %p122
      %p124 = scmp.ne.s32.totalorder %s115, %s116
      %p125 = scmp.eq.s32.totalorder %s30, 0
      %p126 = por %p124, %p125
      %p127 = scmp.ne.s32.totalorder %s115, %s116
      %p128 = scmp.eq.s32.totalorder %s31, 1
      %p129 = por %p127, %p128
      %p131 = scmp.ne.s32.totalorder %s116, %s130
      %p132 = scmp.eq.s32.totalorder %s31, 0
      %p133 = por %p131, %p132
      %s135 = sadd.s32 %s134, 1
      %p138 = scmp.eq.s32.totalorder %s25, 1
      %p139 = scmp.ne.s32.totalorder %s134, %s136
      %p140 = scmp.eq.s32.totalorder %s25, 0
      %p141 = por %p139, %p140
      %p142 = scmp.ne.s32.totalorder %s134, %s136
      %p143 = scmp.eq.s32.totalorder %s30, 1
      %p144 = por %p142, %p143
      %p145 = scmp.ne.s32.totalorder %s136, %s137
      %p146 = scmp.eq.s32.totalorder %s30, 0
      %p147 = por %p145, %p146
      %p148 = scmp.ne.s32.totalorder %s136, %s137
      %p149 = scmp.eq.s32.totalorder %s31, 1
      %p150 = por %p148, %p149
      %p152 = scmp.ne.s32.totalorder %s137, %s151
      %p153 = scmp.eq.s32.totalorder %s31, 0
      %p154 = por %p152, %p153
      %s156 = sadd.s32 %s155, 1
      %p159 = scmp.eq.s32.totalorder %s25, 1
      %p160 = scmp.ne.s32.totalorder %s155, %s157
      %p161 = scmp.eq.s32.totalorder %s25, 0
      %p162 = por %p160, %p161
      %p163 = scmp.ne.s32.totalorder %s155, %s157
      %p164 = scmp.eq.s32.totalorder %s30, 1
      %p165 = por %p163, %p164
      %p166 = scmp.ne.s32.totalorder %s157, %s158
      %p167 = scmp.eq.s32.totalorder %s30, 0
      %p168 = por %p166, %p167
      %p169 = scmp.ne.s32.totalorder %s157, %s158
      %p170 = scmp.eq.s32.totalorder %s31, 1
      %p171 = por %p169, %p170
      %p173 = scmp.ne.s32.totalorder %s158, %s172
      %p174 = scmp.eq.s32.totalorder %s31, 0
      %p175 = por %p173, %p174
      %s176 = ssub.s32 %s33, %s40
      %p177 = scmp.eq.s32.totalorder %s176, 0
      %s179 = sadd.s32 %s178, 1
      %s180 = scalar_select %p177, %s178, %s179
      %p183 = pneg %p177
      %p184 = scmp.eq.s32.totalorder %s25, 1
      %p185 = por %p183, %p184
      %p186 = scmp.ne.s32.totalorder %s178, %s181
      %p187 = scmp.eq.s32.totalorder %s25, 0
      %p188 = por %p186, %p187
      %p189 = scmp.ne.s32.totalorder %s178, %s181
      %p190 = scmp.eq.s32.totalorder %s30, 1
      %p191 = por %p189, %p190
      %p192 = scmp.ne.s32.totalorder %s181, %s182
      %p193 = scmp.eq.s32.totalorder %s30, 0
      %p194 = por %p192, %p193
      %p195 = scmp.ne.s32.totalorder %s181, %s182
      %p196 = scmp.eq.s32.totalorder %s31, 1
      %p197 = por %p195, %p196
      %p199 = scmp.ne.s32.totalorder %s182, %s198
      %p200 = scmp.eq.s32.totalorder %s31, 0
      %p201 = por %p199, %p200
      %s203 = sadd.s32 %s202, 1
      %p206 = scmp.eq.s32.totalorder %s25, 1
      %p207 = scmp.ne.s32.totalorder %s202, %s204
      %p208 = scmp.eq.s32.totalorder %s25, 0
      %p209 = por %p207, %p208
      %p210 = scmp.ne.s32.totalorder %s202, %s204
      %p211 = scmp.eq.s32.totalorder %s30, 1
      %p212 = por %p210, %p211
      %p213 = scmp.ne.s32.totalorder %s204, %s205
      %p214 = scmp.eq.s32.totalorder %s30, 0
      %p215 = por %p213, %p214
      %p216 = scmp.ne.s32.totalorder %s204, %s205
      %p217 = scmp.eq.s32.totalorder %s31, 1
      %p218 = por %p216, %p217
      %p220 = scmp.ne.s32.totalorder %s205, %s219
      %p221 = scmp.eq.s32.totalorder %s31, 0
      %p222 = por %p220, %p221
      %s224 = sadd.s32 %s223, 1
      %p227 = scmp.eq.s32.totalorder %s25, 1
      %p228 = scmp.ne.s32.totalorder %s223, %s225
      %p229 = scmp.eq.s32.totalorder %s25, 0
      %p230 = por %p228, %p229
      %p231 = scmp.ne.s32.totalorder %s223, %s225
      %p232 = scmp.eq.s32.totalorder %s30, 1
      %p233 = por %p231, %p232
      %p234 = scmp.ne.s32.totalorder %s225, %s226
      %p235 = scmp.eq.s32.totalorder %s30, 0
      %p236 = por %p234, %p235
      %p237 = scmp.ne.s32.totalorder %s225, %s226
      %p238 = scmp.eq.s32.totalorder %s31, 1
      %p239 = por %p237, %p238
      %p241 = scmp.ne.s32.totalorder %s226, %s240
      %p242 = scmp.eq.s32.totalorder %s31, 0
      %p243 = por %p241, %p242
      %s245 = sadd.s32 %s244, 1
      %p248 = scmp.eq.s32.totalorder %s25, 1
      %p249 = scmp.ne.s32.totalorder %s244, %s246
      %p250 = scmp.eq.s32.totalorder %s25, 0
      %p251 = por %p249, %p250
      %p252 = scmp.ne.s32.totalorder %s244, %s246
      %p253 = scmp.eq.s32.totalorder %s30, 1
      %p254 = por %p252, %p253
      %p255 = scmp.ne.s32.totalorder %s246, %s247
      %p256 = scmp.eq.s32.totalorder %s30, 0
      %p257 = por %p255, %p256
      %p258 = scmp.ne.s32.totalorder %s246, %s247
      %p259 = scmp.eq.s32.totalorder %s31, 1
      %p260 = por %p258, %p259
      %p262 = scmp.ne.s32.totalorder %s247, %s261
      %p263 = scmp.eq.s32.totalorder %s31, 0
      %p264 = por %p262, %p263
      %s266 = sadd.s32 %s265, 1
      %p269 = scmp.eq.s32.totalorder %s25, 1
      %p270 = scmp.ne.s32.totalorder %s265, %s267
      %p271 = scmp.eq.s32.totalorder %s25, 0
      %p272 = por %p270, %p271
      %p273 = scmp.ne.s32.totalorder %s265, %s267
      %p274 = scmp.eq.s32.totalorder %s30, 1
      %p275 = por %p273, %p274
      %p276 = scmp.ne.s32.totalorder %s267, %s268
      %p277 = scmp.eq.s32.totalorder %s30, 0
      %p278 = por %p276, %p277
      %p279 = scmp.ne.s32.totalorder %s267, %s268
      %p280 = scmp.eq.s32.totalorder %s31, 1
      %p281 = por %p279, %p280
      %p283 = scmp.ne.s32.totalorder %s268, %s282
      %p284 = scmp.eq.s32.totalorder %s31, 0
      %p285 = por %p283, %p284
      %s287 = sadd.s32 %s286, 1
      %p290 = scmp.eq.s32.totalorder %s25, 1
      %p291 = scmp.ne.s32.totalorder %s286, %s288
      %p292 = scmp.eq.s32.totalorder %s25, 0
      %p293 = por %p291, %p292
      %p294 = scmp.ne.s32.totalorder %s286, %s288
      %p295 = scmp.eq.s32.totalorder %s30, 1
      %p296 = por %p294, %p295
      %p297 = scmp.ne.s32.totalorder %s288, %s289
      %p298 = scmp.eq.s32.totalorder %s30, 0
      %p299 = por %p297, %p298
      %p300 = scmp.ne.s32.totalorder %s288, %s289
      %p301 = scmp.eq.s32.totalorder %s31, 1
      %p302 = por %p300, %p301
      %p304 = scmp.ne.s32.totalorder %s289, %s303
      %p305 = scmp.eq.s32.totalorder %s31, 0
      %p306 = por %p304, %p305
      %s308 = sadd.s32 %s307, 1
      %p311 = scmp.eq.s32.totalorder %s25, 1
      %p312 = scmp.ne.s32.totalorder %s307, %s309
      %p313 = scmp.eq.s32.totalorder %s25, 0
      %p314 = por %p312, %p313
      %p315 = scmp.ne.s32.totalorder %s307, %s309
      %p316 = scmp.eq.s32.totalorder %s30, 1
      %p317 = por %p315, %p316
      %p318 = scmp.ne.s32.totalorder %s309, %s310
      %p319 = scmp.eq.s32.totalorder %s30, 0
      %p320 = por %p318, %p319
      %p321 = scmp.ne.s32.totalorder %s309, %s310
      %p322 = scmp.eq.s32.totalorder %s31, 1
      %p323 = por %p321, %p322
      %p325 = scmp.ne.s32.totalorder %s310, %s324
      %p326 = scmp.eq.s32.totalorder %s31, 0
      %p327 = por %p325, %p326
      %s329 = sadd.s32 %s328, 1
      %p332 = scmp.eq.s32.totalorder %s25, 1
      %p333 = scmp.ne.s32.totalorder %s328, %s330
      %p334 = scmp.eq.s32.totalorder %s25, 0
      %p335 = por %p333, %p334
      %p336 = scmp.ne.s32.totalorder %s328, %s330
      %p337 = scmp.eq.s32.totalorder %s30, 1
      %p338 = por %p336, %p337
      %p339 = scmp.ne.s32.totalorder %s330, %s331
      %p340 = scmp.eq.s32.totalorder %s30, 0
      %p341 = por %p339, %p340
      %p342 = scmp.ne.s32.totalorder %s330, %s331
      %p343 = scmp.eq.s32.totalorder %s31, 1
      %p344 = por %p342, %p343
      %p346 = scmp.ne.s32.totalorder %s331, %s345
      %p347 = scmp.eq.s32.totalorder %s31, 0
      %p348 = por %p346, %p347
      %s350 = sadd.s32 %s349, 1
      %p353 = scmp.eq.s32.totalorder %s25, 1
      %p354 = scmp.ne.s32.totalorder %s349, %s351
      %p355 = scmp.eq.s32.totalorder %s25, 0
      %p356 = por %p354, %p355
      %p357 = scmp.ne.s32.totalorder %s349, %s351
      %p358 = scmp.eq.s32.totalorder %s30, 1
      %p359 = por %p357, %p358
      %p360 = scmp.ne.s32.totalorder %s351, %s352
      %p361 = scmp.eq.s32.totalorder %s30, 0
      %p362 = por %p360, %p361
      %p363 = scmp.ne.s32.totalorder %s351, %s352
      %p364 = scmp.eq.s32.totalorder %s31, 1
      %p365 = por %p363, %p364
      %p367 = scmp.ne.s32.totalorder %s352, %s366
      %p368 = scmp.eq.s32.totalorder %s31, 0
      %p369 = por %p367, %p368
      %s370 = ssub.s32 %s32, %s44
      %s371 = ssub.s32 %s33, %s40
      %s372 = sor.u32 %s370, %s371
      %p373 = scmp.eq.s32.totalorder %s372, 0
      %s375 = sadd.s32 %s374, 1
      %s376 = scalar_select %p373, %s374, %s375
      %p379 = pneg %p373
      %p380 = scmp.eq.s32.totalorder %s25, 1
      %p381 = por %p379, %p380
      %p382 = scmp.ne.s32.totalorder %s374, %s377
      %p383 = scmp.eq.s32.totalorder %s25, 0
      %p384 = por %p382, %p383
      %p385 = scmp.ne.s32.totalorder %s374, %s377
      %p386 = scmp.eq.s32.totalorder %s30, 1
      %p387 = por %p385, %p386
      %p388 = scmp.ne.s32.totalorder %s377, %s378
      %p389 = scmp.eq.s32.totalorder %s30, 0
      %p390 = por %p388, %p389
      %p391 = scmp.ne.s32.totalorder %s377, %s378
      %p392 = scmp.eq.s32.totalorder %s31, 1
      %p393 = por %p391, %p392
      %p395 = scmp.ne.s32.totalorder %s378, %s394
      %p396 = scmp.eq.s32.totalorder %s31, 0
      %p397 = por %p395, %p396
      %p398 = scmp.le.s32.totalorder 1, %s25
      %p399 = scmp.lt.s32.totalorder %s25, 3
      %p400 = pnand %p398, %p399
      %p401 = pneg %p400
      // Predicated region
      $region9: #{tpu_custom_call.1} parent=5 // pred_check
        _
      $region10: #{tpu_custom_call.1} parent=5 // pred_check_branch
        %403 = sbr.rel (%p400) target = $region12
      $region11: #{tpu_custom_call.1} parent=5 // pred_region
        %s404 = ssub.s32 %s25, 1
        // Predicated region
        $region13: #{tpu_custom_call.1} parent=11 // pred_check
          %p405 = pneg %p84
        $region14: #{tpu_custom_call.1} parent=11 // pred_check_branch
          %407 = sbr.rel (%p405) target = $region16
        $region15: #{tpu_custom_call.1} parent=11 // pred_region
          _
        $region16: #{tpu_custom_call.1} parent=11 // pred_fallthru
          _
        // Predicated region
        $region17: #{tpu_custom_call.1} parent=11 // pred_check
          %p408 = pneg %p105
        $region18: #{tpu_custom_call.1} parent=11 // pred_check_branch
          %410 = sbr.rel (%p408) target = $region20
        $region19: #{tpu_custom_call.1} parent=11 // pred_region
          _
        $region20: #{tpu_custom_call.1} parent=11 // pred_fallthru
          _
        // Predicated region
        $region21: #{tpu_custom_call.1} parent=11 // pred_check
          %p411 = pneg %p126
        $region22: #{tpu_custom_call.1} parent=11 // pred_check_branch
          %413 = sbr.rel (%p411) target = $region24
        $region23: #{tpu_custom_call.1} parent=11 // pred_region
          _
        $region24: #{tpu_custom_call.1} parent=11 // pred_fallthru
          _
        // Predicated region
        $region25: #{tpu_custom_call.1} parent=11 // pred_check
          %p414 = pneg %p147
        $region26: #{tpu_custom_call.1} parent=11 // pred_check_branch
          %416 = sbr.rel (%p414) target = $region28
        $region27: #{tpu_custom_call.1} parent=11 // pred_region
          _
        $region28: #{tpu_custom_call.1} parent=11 // pred_fallthru
          _
        // Predicated region
        $region29: #{tpu_custom_call.1} parent=11 // pred_check
          %p417 = pneg %p168
        $region30: #{tpu_custom_call.1} parent=11 // pred_check_branch
          %419 = sbr.rel (%p417) target = $region32
        $region31: #{tpu_custom_call.1} parent=11 // pred_region
          _
        $region32: #{tpu_custom_call.1} parent=11 // pred_fallthru
          _
        // Predicated region
        $region33: #{tpu_custom_call.1} parent=11 // pred_check
          %p420 = pneg %p194
        $region34: #{tpu_custom_call.1} parent=11 // pred_check_branch
          %422 = sbr.rel (%p420) target = $region36
        $region35: #{tpu_custom_call.1} parent=11 // pred_region
          %p423 = scmp.lt.s32.totalorder %s35, 0
          %s424 = scalar_select %p423, %s35, 0
          %s425 = smul.addr %s424, 8
          %s426 = scalar_lea.vmem %s6, %s425
        $region36: #{tpu_custom_call.1} parent=11 // pred_fallthru
          _
        // Predicated region
        $region37: #{tpu_custom_call.1} parent=11 // pred_check
          %p427 = pneg %p215
        $region38: #{tpu_custom_call.1} parent=11 // pred_check_branch
          %429 = sbr.rel (%p427) target = $region40
        $region39: #{tpu_custom_call.1} parent=11 // pred_region
          %s431 = ssub.s32 128, 128
          %432 = vsyncadd [#allocation6], %s431
          %s434 = sshll.u32 [#allocation5], 4
          %s435 = int_to_ptr.vmem [resolvable:$true] %s434
          %437 = dma.hbm_to_vmem [thread:$0]  %s7, 128, %s435, [#allocation6]
        $region40: #{tpu_custom_call.1} parent=11 // pred_fallthru
          _
        // Predicated region
        $region41: #{tpu_custom_call.1} parent=11 // pred_check
          %p438 = pneg %p236
        $region42: #{tpu_custom_call.1} parent=11 // pred_check_branch
          %440 = sbr.rel (%p438) target = $region44
        $region43: #{tpu_custom_call.1} parent=11 // pred_region
          _
        $region44: #{tpu_custom_call.1} parent=11 // pred_fallthru
          _
        // Predicated region
        $region45: #{tpu_custom_call.1} parent=11 // pred_check
          %p441 = pneg %p257
        $region46: #{tpu_custom_call.1} parent=11 // pred_check_branch
          %443 = sbr.rel (%p441) target = $region48
        $region47: #{tpu_custom_call.1} parent=11 // pred_region
          _
        $region48: #{tpu_custom_call.1} parent=11 // pred_fallthru
          _
        // Predicated region
        $region49: #{tpu_custom_call.1} parent=11 // pred_check
          %p444 = pneg %p278
        $region50: #{tpu_custom_call.1} parent=11 // pred_check_branch
          %446 = sbr.rel (%p444) target = $region52
        $region51: #{tpu_custom_call.1} parent=11 // pred_region
          _
        $region52: #{tpu_custom_call.1} parent=11 // pred_fallthru
          _
        // Predicated region
        $region53: #{tpu_custom_call.1} parent=11 // pred_check
          %p447 = pneg %p299
        $region54: #{tpu_custom_call.1} parent=11 // pred_check_branch
          %449 = sbr.rel (%p447) target = $region56
        $region55: #{tpu_custom_call.1} parent=11 // pred_region
          _
        $region56: #{tpu_custom_call.1} parent=11 // pred_fallthru
          _
        // Predicated region
        $region57: #{tpu_custom_call.1} parent=11 // pred_check
          %p450 = pneg %p320
        $region58: #{tpu_custom_call.1} parent=11 // pred_check_branch
          %452 = sbr.rel (%p450) target = $region60
        $region59: #{tpu_custom_call.1} parent=11 // pred_region
          _
        $region60: #{tpu_custom_call.1} parent=11 // pred_fallthru
          _
        // Predicated region
        $region61: #{tpu_custom_call.1} parent=11 // pred_check
          %p453 = pneg %p341
        $region62: #{tpu_custom_call.1} parent=11 // pred_check_branch
          %455 = sbr.rel (%p453) target = $region64
        $region63: #{tpu_custom_call.1} parent=11 // pred_region
          _
        $region64: #{tpu_custom_call.1} parent=11 // pred_fallthru
          _
        // Predicated region
        $region65: #{tpu_custom_call.1} parent=11 // pred_check
          %p456 = pneg %p362
        $region66: #{tpu_custom_call.1} parent=11 // pred_check_branch
          %458 = sbr.rel (%p456) target = $region68
        $region67: #{tpu_custom_call.1} parent=11 // pred_region
          _
        $region68: #{tpu_custom_call.1} parent=11 // pred_fallthru
          _
      $region12: #{tpu_custom_call.1} parent=5 // pred_fallthru
        _
      %p459 = scmp.lt.s32.totalorder %s25, 2
      // Predicated region
      $region69: #{tpu_custom_call.1} parent=5 // pred_check
        %p460 = pneg %p459
      $region70: #{tpu_custom_call.1} parent=5 // pred_check_branch
        %462 = sbr.rel (%p460) target = $region72
      $region71: #{tpu_custom_call.1} parent=5 // pred_region
        // Predicated region
        $region73: #{tpu_custom_call.1} parent=71 // pred_check
          %p463 = pneg %p57
        $region74: #{tpu_custom_call.1} parent=71 // pred_check_branch
          %465 = sbr.rel (%p463) target = $region76
        $region75: #{tpu_custom_call.1} parent=71 // pred_region
          %p466 = scmp.lt.s32.totalorder %s32, 1
          %s467 = scalar_select %p466, %s32, 1
          %s468 = smul.addr %s467, 8
          %s469 = scalar_lea.vmem %s0, %s468
        $region76: #{tpu_custom_call.1} parent=71 // pred_fallthru
          _
      $region72: #{tpu_custom_call.1} parent=5 // pred_fallthru
        _
      %p470 = scmp.le.s32.totalorder 1, %s25
      %p471 = scmp.lt.s32.totalorder %s25, 3
      %p472 = pnand %p470, %p471
      %p473 = pneg %p472
      // Predicated region
      $region77: #{tpu_custom_call.1} parent=5 // pred_check
        _
      $region78: #{tpu_custom_call.1} parent=5 // pred_check_branch
        %475 = sbr.rel (%p472) target = $region80
      $region79: #{tpu_custom_call.1} parent=5 // pred_region
        %s476 = ssub.s32 %s25, 1
        // Predicated region
        $region81: #{tpu_custom_call.1} parent=79 // pred_check
          %p477 = pneg %p215
        $region82: #{tpu_custom_call.1} parent=79 // pred_check_branch
          %479 = sbr.rel (%p477) target = $region84
        $region83: #{tpu_custom_call.1} parent=79 // pred_region
          %480 = dma.done [#allocation6], 128
        $region84: #{tpu_custom_call.1} parent=79 // pred_fallthru
          _
        %p481 = scmp.lt.s32.totalorder %s34, 1
        %s482 = scalar_select %p481, %s34, 1
        %s483 = smul.addr %s482, 8
        %s484 = scalar_lea.vmem %s0, %s483
        %p485 = pneg %p63
        %p486 = pneg %p60
        %p487 = pneg %p84
        %p488 = pneg %p81
        %p489 = pneg %p105
        %p490 = pneg %p102
        %p491 = pneg %p126
        %p492 = pneg %p123
        %p493 = pneg %p147
        %p494 = pneg %p144
        %p495 = pneg %p168
        %p496 = pneg %p165
        %p497 = scmp.lt.s32.totalorder %s35, 0
        %s498 = scalar_select %p497, %s35, 0
        %s499 = smul.addr %s498, 8
        %s500 = scalar_lea.vmem %s6, %s499
        %p501 = pneg %p194
        %p502 = pneg %p191
        %p503 = pneg %p215
        %p504 = pneg %p212
        %p505 = pneg %p236
        %p506 = pneg %p233
        %p507 = pneg %p257
        %p508 = pneg %p254
        %p509 = pneg %p278
        %p510 = pneg %p275
        %p511 = pneg %p299
        %p512 = pneg %p296
        %p513 = pneg %p320
        %p514 = pneg %p317
        %p515 = pneg %p341
        %p516 = pneg %p338
        %p517 = pneg %p362
        %p518 = pneg %p359
        %p519 = pneg %p390
        %p520 = pneg %p387
        %s521 = sand.u32 %s377, 1
        %s522 = scalar_lea.sflag [#allocation7], %s521
        %s523 = sand.u32 %s377, 1
        %s524 = smul.addr %s523, 8
        %s525 = scalar_lea.vmem [#allocation8], %s524
        %p526 = scmp.lt.s32.totalorder %s34, 1
        %s527 = scalar_select %p526, %s34, 1
        %s528 = smul.addr %s527, 8
        %s529 = scalar_lea.vmem %s0, %s528
        %p530 = scmp.lt.s32.totalorder %s35, 0
        %s531 = scalar_select %p530, %s35, 0
        %s532 = smul.addr %s531, 8
        %s533 = scalar_lea.vmem %s6, %s532
        %s534 = smul.u32 %s35, 8
        %v535 = vld [vmem:[%s5] sm:$0x1]
        %p536 = scmp.eq.s32.totalorder %s35, 0
        // Predicated region
        $region85: #{tpu_custom_call.1} parent=79 // pred_check
          %p537 = pneg %p536
        $region86: #{tpu_custom_call.1} parent=79 // pred_check_branch
          %539 = sbr.rel (%p537) target = $region88
        $region87: #{tpu_custom_call.1} parent=79 // pred_region
          %v540 = vld [vmem:[%s529] sm:$0xff]
          %v541 = vmul.f32 %v540, %v540
          %vm542 = vcmask 261120
          %v543 = vsel %vm542, %v541, 0.0
          %544 = vadd.xlane.f32.xlu0 %v543
          %v545 = vpop.xlane.xlu0 %544
          %v546 = vrcp.pop 32.0
          %v547 = vmul.f32 %v545, %v546
          %v548 = vadd.f32 %v547, 1.1920929e-07
          %v549 = vrsqrt.pop %v548
          %v550 = vmul.f32 %v540, %v549
          %v552 = vlaneseq
          %v553 = vshrl.u32 %v552, 7
          %v554 = vsub.s32 0, %v553
          %v555 = vrot.slane %v535, %v554
          %v557 = vmul.f32 %v550, %v555
          %v558 = vld [vmem:[%s2] sm:$0xff]
          %v559 = vld [vmem:[%s2 + $0x8] sm:$0xff]
          %v560 = vld [vmem:[%s2 + $0x10] sm:$0xff]
          %v561 = vld [vmem:[%s2 + $0x18] sm:$0xff]
          %v563 = vsel %vm542, %v557, 0
          %565 = vmatprep.subr.mxu0 0.0
          %566 = vmatpush1.msra.mxu0 0.0
          %567 = vmatprep.subr.mxu0 0.0
          %568 = vmatpush1.msra.mxu0 0.0
          %569 = vmatprep.subr.mxu0 0.0
          %570 = vmatpush1.msra.mxu0 0.0
          %571 = vmatprep.subr.mxu0 0.0
          %572 = vmatpush1.msra.mxu0 0.0
          %573 = vmatprep.subr.mxu0 0.0
          %574 = vmatpush1.msra.mxu0 0.0
          %575 = vmatprep.subr.mxu0 0.0
          %576 = vmatpush1.msra.mxu0 0.0
          %577 = vmatprep.subr.mxu0 0.0
          %578 = vmatpush1.msra.mxu0 0.0
          %579 = vmatprep.subr.mxu0 0.0
          %580 = vmatpush1.msra.mxu0 0.0
          %581 = vmatprep.subr.mxu0 0.0
          %582 = vmatpush1.msra.mxu0 0.0
          %583 = vmatprep.subr.mxu0 0.0
          %584 = vmatpush1.msra.mxu0 0.0
          %585 = vmatprep.subr.mxu0 0.0
          %586 = vmatpush1.msra.mxu0 0.0
          %587 = vmatprep.subr.mxu0 0.0
          %588 = vmatpush1.msra.mxu0 0.0
          %589 = vmatprep.subr.mxu0 0.0
          %590 = vmatpush1.msra.mxu0 %v561
          %591 = vmatprep.subr.mxu0 0.0
          %592 = vmatpush1.msra.mxu0 %v560
          %593 = vmatprep.subr.mxu0 0.0
          %594 = vmatpush1.msra.mxu0 %v559
          %595 = vmatprep.subr.mxu0 0.0
          %596 = vmatpush1.msra.mxu0 %v558
          %597 = vmatprep.subr.mxu0 0.0
          %598 = vmatpush2.msra.mxu0 0.0
          %599 = vmatprep.subr.mxu0 0.0
          %600 = vmatpush2.msra.mxu0 0.0
          %601 = vmatprep.subr.mxu0 0.0
          %602 = vmatpush2.msra.mxu0 0.0
          %603 = vmatprep.subr.mxu0 0.0
          %604 = vmatpush2.msra.mxu0 0.0
          %605 = vmatprep.subr.mxu0 0.0
          %606 = vmatpush2.msra.mxu0 0.0
          %607 = vmatprep.subr.mxu0 0.0
          %608 = vmatpush2.msra.mxu0 0.0
          %609 = vmatprep.subr.mxu0 0.0
          %610 = vmatpush2.msra.mxu0 0.0
          %611 = vmatprep.subr.mxu0 0.0
          %612 = vmatpush2.msra.mxu0 0.0
          %613 = vmatprep.subr.mxu0 0.0
          %614 = vmatpush2.msra.mxu0 0.0
          %615 = vmatprep.subr.mxu0 0.0
          %616 = vmatpush2.msra.mxu0 0.0
          %617 = vmatprep.subr.mxu0 0.0
          %618 = vmatpush2.msra.mxu0 0.0
          %619 = vmatprep.subr.mxu0 0.0
          %620 = vmatpush2.msra.mxu0 0.0
          %621 = vmatprep.subr.mxu0 0.0
          %622 = vmatpush2.msra.mxu0 0.0
          %623 = vmatprep.subr.mxu0 0.0
          %624 = vmatpush2.msra.mxu0 0.0
          %625 = vmatprep.subr.mxu0 0.0
          %626 = vmatpush2.msra.mxu0 0.0
          %627 = vmatprep.subr.mxu0 0.0
          %628 = vmatpush2.msra.mxu0 0.0
          %629 = vmatprep.mubr.f32.mxu0 0.0
          %630 = vmatmul.mubr.f32.gmra.mxu0 %v563
          %v631 = vpop.f32.mrf.mxu0
          %v632 = vadd.f32 0.0, %v631
          %v633 = vpop.f32.mrf.mxu0
          %634 = vdwg.mxu0
          %v635 = vld [vmem:[%s3] sm:$0xff]
          %v636 = vld [vmem:[%s3 + $0x8] sm:$0xff]
          %v637 = vld [vmem:[%s3 + $0x10] sm:$0xff]
          %v638 = vld [vmem:[%s3 + $0x18] sm:$0xff]
          %639 = vmatprep.subr.mxu0 0.0
          %640 = vmatpush1.msra.mxu0 0.0
          %641 = vmatprep.subr.mxu0 0.0
          %642 = vmatpush1.msra.mxu0 0.0
          %643 = vmatprep.subr.mxu0 0.0
          %644 = vmatpush1.msra.mxu0 0.0
          %645 = vmatprep.subr.mxu0 0.0
          %646 = vmatpush1.msra.mxu0 0.0
          %647 = vmatprep.subr.mxu0 0.0
          %648 = vmatpush1.msra.mxu0 0.0
          %649 = vmatprep.subr.mxu0 0.0
          %650 = vmatpush1.msra.mxu0 0.0
          %651 = vmatprep.subr.mxu0 0.0
          %652 = vmatpush1.msra.mxu0 0.0
          %653 = vmatprep.subr.mxu0 0.0
          %654 = vmatpush1.msra.mxu0 0.0
          %655 = vmatprep.subr.mxu0 0.0
          %656 = vmatpush1.msra.mxu0 0.0
          %657 = vmatprep.subr.mxu0 0.0
          %658 = vmatpush1.msra.mxu0 0.0
          %659 = vmatprep.subr.mxu0 0.0
          %660 = vmatpush1.msra.mxu0 0.0
          %661 = vmatprep.subr.mxu0 0.0
          %662 = vmatpush1.msra.mxu0 0.0
          %663 = vmatprep.subr.mxu0 0.0
          %664 = vmatpush1.msra.mxu0 %v638
          %665 = vmatprep.subr.mxu0 0.0
          %666 = vmatpush1.msra.mxu0 %v637
          %667 = vmatprep.subr.mxu0 0.0
          %668 = vmatpush1.msra.mxu0 %v636
          %669 = vmatprep.subr.mxu0 0.0
          %670 = vmatpush1.msra.mxu0 %v635
          %671 = vmatprep.subr.mxu0 0.0
          %672 = vmatpush2.msra.mxu0 0.0
          %673 = vmatprep.subr.mxu0 0.0
          %674 = vmatpush2.msra.mxu0 0.0
          %675 = vmatprep.subr.mxu0 0.0
          %676 = vmatpush2.msra.mxu0 0.0
          %677 = vmatprep.subr.mxu0 0.0
          %678 = vmatpush2.msra.mxu0 0.0
          %679 = vmatprep.subr.mxu0 0.0
          %680 = vmatpush2.msra.mxu0 0.0
          %681 = vmatprep.subr.mxu0 0.0
          %682 = vmatpush2.msra.mxu0 0.0
          %683 = vmatprep.subr.mxu0 0.0
          %684 = vmatpush2.msra.mxu0 0.0
          %685 = vmatprep.subr.mxu0 0.0
          %686 = vmatpush2.msra.mxu0 0.0
          %687 = vmatprep.subr.mxu0 0.0
          %688 = vmatpush2.msra.mxu0 0.0
          %689 = vmatprep.subr.mxu0 0.0
          %690 = vmatpush2.msra.mxu0 0.0
          %691 = vmatprep.subr.mxu0 0.0
          %692 = vmatpush2.msra.mxu0 0.0
          %693 = vmatprep.subr.mxu0 0.0
          %694 = vmatpush2.msra.mxu0 0.0
          %695 = vmatprep.subr.mxu0 0.0
          %696 = vmatpush2.msra.mxu0 0.0
          %697 = vmatprep.subr.mxu0 0.0
          %698 = vmatpush2.msra.mxu0 0.0
          %699 = vmatprep.subr.mxu0 0.0
          %700 = vmatpush2.msra.mxu0 0.0
          %701 = vmatprep.subr.mxu0 0.0
          %702 = vmatpush2.msra.mxu0 0.0
          %703 = vmatprep.mubr.f32.mxu0 0.0
          %704 = vmatmul.mubr.f32.gmra.mxu0 %v563
          %v705 = vpop.f32.mrf.mxu0
          %v706 = vadd.f32 0.0, %v705
          %v707 = vpop.f32.mrf.mxu0
          %708 = vdwg.mxu0
          %v709 = vld [vmem:[#allocation5] sm:$0xff]
          %v710 = vmul.f32 %v632, %v709
          %vm711 = vcmask 64512
          %712 = vst.msk [vmem:[#allocation2] sm:$0xff] %vm711, %v710
          %713 = vst.msk [vmem:[#allocation3] sm:$0xff] %vm711, %v706
          %715 = vrot.lane.b32.xlu0 %v709, 8
          %v716 = vpop.permute.xlu0 %715
          %v718 = vmul.f32 %v632, %v716
          %720 = vrot.lane.b32.xlu0 %v718, 120
          %v721 = vpop.permute.xlu0 %720
          %s723 = scalar_lea.vmem [#allocation2], 8
          %724 = vst.msk [vmem:[%s723] sm:$0xff] %vm711, %v721
          %726 = vrot.lane.b32.xlu0 %v706, 120
          %v727 = vpop.permute.xlu0 %726
          %s729 = scalar_lea.vmem [#allocation3], 8
          %730 = vst.msk [vmem:[%s729] sm:$0xff] %vm711, %v727
        $region88: #{tpu_custom_call.1} parent=79 // pred_fallthru
          _
        %s731 = scalar_lea.vmem %s529, %s534
        %v732 = vld [vmem:[%s731] sm:$0xff]
        %v733 = vmul.f32 %v732, %v732
        %vm734 = vcmask 261120
        %v735 = vsel %vm734, %v733, 0.0
        %736 = vadd.xlane.f32.xlu0 %v735
        %v737 = vpop.xlane.xlu0 %736
        %v738 = vrcp.pop 32.0
        %v739 = vmul.f32 %v737, %v738
        %v740 = vadd.f32 %v739, 1.1920929e-07
        %v741 = vrsqrt.pop %v740
        %v742 = vmul.f32 %v732, %v741
        %v744 = vlaneseq
        %v745 = vshrl.u32 %v744, 7
        %v746 = vsub.s32 0, %v745
        %v747 = vrot.slane %v535, %v746
        %v749 = vmul.f32 %v742, %v747
        %v750 = vld [vmem:[%s1] sm:$0xff]
        %v751 = vld [vmem:[%s1 + $0x8] sm:$0xff]
        %v752 = vld [vmem:[%s1 + $0x10] sm:$0xff]
        %v753 = vld [vmem:[%s1 + $0x18] sm:$0xff]
        %v755 = vsel %vm734, %v749, 0
        %757 = vmatprep.subr.mxu0 0.0
        %758 = vmatpush1.msra.mxu0 0.0
        %759 = vmatprep.subr.mxu0 0.0
        %760 = vmatpush1.msra.mxu0 0.0
        %761 = vmatprep.subr.mxu0 0.0
        %762 = vmatpush1.msra.mxu0 0.0
        %763 = vmatprep.subr.mxu0 0.0
        %764 = vmatpush1.msra.mxu0 0.0
        %765 = vmatprep.subr.mxu0 0.0
        %766 = vmatpush1.msra.mxu0 0.0
        %767 = vmatprep.subr.mxu0 0.0
        %768 = vmatpush1.msra.mxu0 0.0
        %769 = vmatprep.subr.mxu0 0.0
        %770 = vmatpush1.msra.mxu0 0.0
        %771 = vmatprep.subr.mxu0 0.0
        %772 = vmatpush1.msra.mxu0 0.0
        %773 = vmatprep.subr.mxu0 0.0
        %774 = vmatpush1.msra.mxu0 0.0
        %775 = vmatprep.subr.mxu0 0.0
        %776 = vmatpush1.msra.mxu0 0.0
        %777 = vmatprep.subr.mxu0 0.0
        %778 = vmatpush1.msra.mxu0 0.0
        %779 = vmatprep.subr.mxu0 0.0
        %780 = vmatpush1.msra.mxu0 0.0
        %781 = vmatprep.subr.mxu0 0.0
        %782 = vmatpush1.msra.mxu0 %v753
        %783 = vmatprep.subr.mxu0 0.0
        %784 = vmatpush1.msra.mxu0 %v752
        %785 = vmatprep.subr.mxu0 0.0
        %786 = vmatpush1.msra.mxu0 %v751
        %787 = vmatprep.subr.mxu0 0.0
        %788 = vmatpush1.msra.mxu0 %v750
        %789 = vmatprep.subr.mxu0 0.0
        %790 = vmatpush2.msra.mxu0 0.0
        %791 = vmatprep.subr.mxu0 0.0
        %792 = vmatpush2.msra.mxu0 0.0
        %793 = vmatprep.subr.mxu0 0.0
        %794 = vmatpush2.msra.mxu0 0.0
        %795 = vmatprep.subr.mxu0 0.0
        %796 = vmatpush2.msra.mxu0 0.0
        %797 = vmatprep.subr.mxu0 0.0
        %798 = vmatpush2.msra.mxu0 0.0
        %799 = vmatprep.subr.mxu0 0.0
        %800 = vmatpush2.msra.mxu0 0.0
        %801 = vmatprep.subr.mxu0 0.0
        %802 = vmatpush2.msra.mxu0 0.0
        %803 = vmatprep.subr.mxu0 0.0
        %804 = vmatpush2.msra.mxu0 0.0
        %805 = vmatprep.subr.mxu0 0.0
        %806 = vmatpush2.msra.mxu0 0.0
        %807 = vmatprep.subr.mxu0 0.0
        %808 = vmatpush2.msra.mxu0 0.0
        %809 = vmatprep.subr.mxu0 0.0
        %810 = vmatpush2.msra.mxu0 0.0
        %811 = vmatprep.subr.mxu0 0.0
        %812 = vmatpush2.msra.mxu0 0.0
        %813 = vmatprep.subr.mxu0 0.0
        %814 = vmatpush2.msra.mxu0 0.0
        %815 = vmatprep.subr.mxu0 0.0
        %816 = vmatpush2.msra.mxu0 0.0
        %817 = vmatprep.subr.mxu0 0.0
        %818 = vmatpush2.msra.mxu0 0.0
        %819 = vmatprep.subr.mxu0 0.0
        %820 = vmatpush2.msra.mxu0 0.0
        %821 = vmatprep.mubr.f32.mxu0 0.0
        %822 = vmatmul.mubr.f32.gmra.mxu0 %v755
        %v823 = vpop.f32.mrf.mxu0
        %v824 = vadd.f32 0.0, %v823
        %v825 = vpop.f32.mrf.mxu0
        %826 = vdwg.mxu0
        %v827 = vld [vmem:[%s533] sm:$0xff]
        %v828 = vmul.f32 %v824, %v827
        %v829 = vlaneseq
        %v830 = vshrl.u32 %v829, 7
        %v831 = vstv %s534
        %v832 = vadd.s32 %v831, %v830
        %v833 = vlaneseq
        %v834 = vand.u32 %v833, 127
        %s835 = sadd.s32 %s35, 1
        // While loop
        $region89: #{tpu_custom_call.1} parent=79 // loop_pre_header
          _
        $region90: #{tpu_custom_call.1} parent=79 // loop_header
          %s837 = sphi 0, %s839
          %p838 = scmp.ge.s32.totalorder %s837, %s835
          %v842 = vphi -inf, %v934
          %v843 = vphi 0.0, %v945
          %v844 = vphi 0.0, %v1020
        $region91: #{tpu_custom_call.1} parent=79 // loop_header_branch
          %841 = sbr.rel (%p838) target = $region95
        $region92: #{tpu_custom_call.1} parent=79 // loop_body
          %s845 = smul.u32 %s837, 8
          %s846 = scalar_lea.vmem [#allocation2], %s845
          %v847 = vld [vmem:[%s846] sm:$0xff]
          %s848 = scalar_lea.vmem [#allocation3], %s845
          %v849 = vld [vmem:[%s848] sm:$0xff]
          %vm850 = vcmask 64512
          %v852 = vsel %vm850, %v828, 0
          %v855 = vsel %vm850, %v847, 0
          %857 = vmatprep.subr.mxu0 0.0
          %858 = vmatpush1.xpose.msra.mxu0 0.0
          %859 = vmatprep.subr.mxu0 0.0
          %860 = vmatpush1.xpose.msra.mxu0 0.0
          %861 = vmatprep.subr.mxu0 0.0
          %862 = vmatpush1.xpose.msra.mxu0 0.0
          %863 = vmatprep.subr.mxu0 0.0
          %864 = vmatpush1.xpose.msra.mxu0 0.0
          %865 = vmatprep.subr.mxu0 0.0
          %866 = vmatpush1.xpose.msra.mxu0 0.0
          %867 = vmatprep.subr.mxu0 0.0
          %868 = vmatpush1.xpose.msra.mxu0 0.0
          %869 = vmatprep.subr.mxu0 0.0
          %870 = vmatpush1.xpose.msra.mxu0 0.0
          %871 = vmatprep.subr.mxu0 0.0
          %872 = vmatpush1.xpose.msra.mxu0 0.0
          %873 = vmatprep.subr.mxu0 0.0
          %874 = vmatpush1.xpose.msra.mxu0 0.0
          %875 = vmatprep.subr.mxu0 0.0
          %876 = vmatpush1.xpose.msra.mxu0 0.0
          %877 = vmatprep.subr.mxu0 0.0
          %878 = vmatpush1.xpose.msra.mxu0 0.0
          %879 = vmatprep.subr.mxu0 0.0
          %880 = vmatpush1.xpose.msra.mxu0 0.0
          %881 = vmatprep.subr.mxu0 0.0
          %882 = vmatpush1.xpose.msra.mxu0 0.0
          %883 = vmatprep.subr.mxu0 0.0
          %884 = vmatpush1.xpose.msra.mxu0 0.0
          %885 = vmatprep.subr.mxu0 0.0
          %886 = vmatpush1.xpose.msra.mxu0 0.0
          %887 = vmatprep.subr.mxu0 0.0
          %888 = vmatpush1.xpose.msra.mxu0 %v855
          %889 = vmatprep.subr.mxu0 0.0
          %890 = vmatpush2.xpose.msra.mxu0 0.0
          %891 = vmatprep.subr.mxu0 0.0
          %892 = vmatpush2.xpose.msra.mxu0 0.0
          %893 = vmatprep.subr.mxu0 0.0
          %894 = vmatpush2.xpose.msra.mxu0 0.0
          %895 = vmatprep.subr.mxu0 0.0
          %896 = vmatpush2.xpose.msra.mxu0 0.0
          %897 = vmatprep.subr.mxu0 0.0
          %898 = vmatpush2.xpose.msra.mxu0 0.0
          %899 = vmatprep.subr.mxu0 0.0
          %900 = vmatpush2.xpose.msra.mxu0 0.0
          %901 = vmatprep.subr.mxu0 0.0
          %902 = vmatpush2.xpose.msra.mxu0 0.0
          %903 = vmatprep.subr.mxu0 0.0
          %904 = vmatpush2.xpose.msra.mxu0 0.0
          %905 = vmatprep.subr.mxu0 0.0
          %906 = vmatpush2.xpose.msra.mxu0 0.0
          %907 = vmatprep.subr.mxu0 0.0
          %908 = vmatpush2.xpose.msra.mxu0 0.0
          %909 = vmatprep.subr.mxu0 0.0
          %910 = vmatpush2.xpose.msra.mxu0 0.0
          %911 = vmatprep.subr.mxu0 0.0
          %912 = vmatpush2.xpose.msra.mxu0 0.0
          %913 = vmatprep.subr.mxu0 0.0
          %914 = vmatpush2.xpose.msra.mxu0 0.0
          %915 = vmatprep.subr.mxu0 0.0
          %916 = vmatpush2.xpose.msra.mxu0 0.0
          %917 = vmatprep.subr.mxu0 0.0
          %918 = vmatpush2.xpose.msra.mxu0 0.0
          %919 = vmatprep.subr.mxu0 0.0
          %920 = vmatpush2.xpose.msra.mxu0 0.0
          %921 = vmatprep.mubr.f32.mxu0 0.0
          %922 = vmatmul.mubr.f32.gmra.mxu0 %v852
          %v923 = vpop.f32.mrf.mxu0
          %v924 = vadd.f32 0.0, %v923
          %v925 = vpop.f32.mrf.mxu0
          %926 = vdwg.mxu0
          %v927 = vstv %s845
          %v928 = vadd.s32 %v927, %v834
          %vm929 = vcmp.ge.s32.totalorder %v832, %v928
          %v930 = vsel %vm929, %v924, -inf
          %v931 = vsel %vm850, %v930, -inf
          %932 = vmax.xlane.f32.xlu0 %v931
          %v933 = vpop.xlane.xlu0 %932
          %v934 = vmax.f32 %v842, %v933
          %v935 = vsub.f32 %v842, %v934
          %v936 = vmul.f32 %v935, 1.442695
          %v937 = vpow.pop %v936
          %v938 = vsub.f32 %v930, %v934
          %v939 = vmul.f32 %v938, 1.442695
          %v940 = vpow.pop %v939
          %v941 = vmul.f32 %v937, %v843
          %v942 = vsel %vm850, %v940, 0.0
          %943 = vadd.xlane.f32.xlu0 %v942
          %v944 = vpop.xlane.xlu0 %943
          %v945 = vadd.f32 %v941, %v944
          %v946 = vmul.f32 %v937, %v844
          %v948 = vsel %vm850, %v940, 0
          %950 = vmatprep.subr.mxu0 0.0
          %951 = vmatpush1.msra.mxu0 0.0
          %952 = vmatprep.subr.mxu0 0.0
          %953 = vmatpush1.msra.mxu0 0.0
          %954 = vmatprep.subr.mxu0 0.0
          %955 = vmatpush1.msra.mxu0 0.0
          %956 = vmatprep.subr.mxu0 0.0
          %957 = vmatpush1.msra.mxu0 0.0
          %958 = vmatprep.subr.mxu0 0.0
          %959 = vmatpush1.msra.mxu0 0.0
          %960 = vmatprep.subr.mxu0 0.0
          %961 = vmatpush1.msra.mxu0 0.0
          %962 = vmatprep.subr.mxu0 0.0
          %963 = vmatpush1.msra.mxu0 0.0
          %964 = vmatprep.subr.mxu0 0.0
          %965 = vmatpush1.msra.mxu0 0.0
          %966 = vmatprep.subr.mxu0 0.0
          %967 = vmatpush1.msra.mxu0 0.0
          %968 = vmatprep.subr.mxu0 0.0
          %969 = vmatpush1.msra.mxu0 0.0
          %970 = vmatprep.subr.mxu0 0.0
          %971 = vmatpush1.msra.mxu0 0.0
          %972 = vmatprep.subr.mxu0 0.0
          %973 = vmatpush1.msra.mxu0 0.0
          %974 = vmatprep.subr.mxu0 0.0
          %975 = vmatpush1.msra.mxu0 0.0
          %976 = vmatprep.subr.mxu0 0.0
          %977 = vmatpush1.msra.mxu0 0.0
          %978 = vmatprep.subr.mxu0 0.0
          %979 = vmatpush1.msra.mxu0 0.0
          %980 = vmatprep.subr.mxu0 0.0
          %981 = vmatpush1.msra.mxu0 %v849
          %982 = vmatprep.subr.mxu0 0.0
          %983 = vmatpush2.msra.mxu0 0.0
          %984 = vmatprep.subr.mxu0 0.0
          %985 = vmatpush2.msra.mxu0 0.0
          %986 = vmatprep.subr.mxu0 0.0
          %987 = vmatpush2.msra.mxu0 0.0
          %988 = vmatprep.subr.mxu0 0.0
          %989 = vmatpush2.msra.mxu0 0.0
          %990 = vmatprep.subr.mxu0 0.0
          %991 = vmatpush2.msra.mxu0 0.0
          %992 = vmatprep.subr.mxu0 0.0
          %993 = vmatpush2.msra.mxu0 0.0
          %994 = vmatprep.subr.mxu0 0.0
          %995 = vmatpush2.msra.mxu0 0.0
          %996 = vmatprep.subr.mxu0 0.0
          %997 = vmatpush2.msra.mxu0 0.0
          %998 = vmatprep.subr.mxu0 0.0
          %999 = vmatpush2.msra.mxu0 0.0
          %1000 = vmatprep.subr.mxu0 0.0
          %1001 = vmatpush2.msra.mxu0 0.0
          %1002 = vmatprep.subr.mxu0 0.0
          %1003 = vmatpush2.msra.mxu0 0.0
          %1004 = vmatprep.subr.mxu0 0.0
          %1005 = vmatpush2.msra.mxu0 0.0
          %1006 = vmatprep.subr.mxu0 0.0
          %1007 = vmatpush2.msra.mxu0 0.0
          %1008 = vmatprep.subr.mxu0 0.0
          %1009 = vmatpush2.msra.mxu0 0.0
          %1010 = vmatprep.subr.mxu0 0.0
          %1011 = vmatpush2.msra.mxu0 0.0
          %1012 = vmatprep.subr.mxu0 0.0
          %1013 = vmatpush2.msra.mxu0 0.0
          %1014 = vmatprep.mubr.f32.mxu0 0.0
          %1015 = vmatmul.mubr.f32.gmra.mxu0 %v948
          %v1016 = vpop.f32.mrf.mxu0
          %v1017 = vadd.f32 0.0, %v1016
          %v1018 = vpop.f32.mrf.mxu0
          %1019 = vdwg.mxu0
          %v1020 = vadd.f32 %v946, %v1017
        $region93: #{tpu_custom_call.1} parent=79 // loop_footer
          %s839 = sadd.s32 %s837, 1
        $region94: #{tpu_custom_call.1} parent=79 // loop_footer_branch
          %836 = sbr.rel target = $region90
        $region95: #{tpu_custom_call.1} parent=79 // loop_exit
          _
        %v1021 = vrcp.pop %v843
        %v1022 = vmul.f32 %v843, %v1021
        %v1023 = vsub.f32 2.0, %v1022
        %v1024 = vmul.f32 %v1021, %v1023
        %v1025 = vmul.f32 %v844, %v1024
        %vm1026 = vcmask 64512
        %1027 = vst.msk [vmem:[#allocation4] sm:$0xff] %vm1026, %v1025
        // While loop
        $region96: #{tpu_custom_call.1} parent=79 // loop_pre_header
          _
        $region97: #{tpu_custom_call.1} parent=79 // loop_header
          %s1029 = sphi 0, %s1031
          %p1030 = scmp.ge.s32.totalorder %s1029, %s835
          %v1034 = vphi -inf, %v1128
          %v1035 = vphi 0.0, %v1139
          %v1036 = vphi 0.0, %v1214
        $region98: #{tpu_custom_call.1} parent=79 // loop_header_branch
          %1033 = sbr.rel (%p1030) target = $region102
        $region99: #{tpu_custom_call.1} parent=79 // loop_body
          %s1037 = smul.u32 %s1029, 8
          %s1038 = sadd.s32 %s1037, 8
          %s1039 = scalar_lea.vmem [#allocation2], %s1038
          %v1040 = vld [vmem:[%s1039] sm:$0xff]
          %s1041 = scalar_lea.vmem [#allocation3], %s1038
          %v1042 = vld [vmem:[%s1041] sm:$0xff]
          %1044 = vrot.lane.b32.xlu0 %v828, 120
          %v1045 = vpop.permute.xlu0 %1044
          %v1046 = vsel %vm1026, %v1045, 0
          %v1049 = vsel %vm1026, %v1040, 0
          %1051 = vmatprep.subr.mxu0 0.0
          %1052 = vmatpush1.xpose.msra.mxu0 0.0
          %1053 = vmatprep.subr.mxu0 0.0
          %1054 = vmatpush1.xpose.msra.mxu0 0.0
          %1055 = vmatprep.subr.mxu0 0.0
          %1056 = vmatpush1.xpose.msra.mxu0 0.0
          %1057 = vmatprep.subr.mxu0 0.0
          %1058 = vmatpush1.xpose.msra.mxu0 0.0
          %1059 = vmatprep.subr.mxu0 0.0
          %1060 = vmatpush1.xpose.msra.mxu0 0.0
          %1061 = vmatprep.subr.mxu0 0.0
          %1062 = vmatpush1.xpose.msra.mxu0 0.0
          %1063 = vmatprep.subr.mxu0 0.0
          %1064 = vmatpush1.xpose.msra.mxu0 0.0
          %1065 = vmatprep.subr.mxu0 0.0
          %1066 = vmatpush1.xpose.msra.mxu0 0.0
          %1067 = vmatprep.subr.mxu0 0.0
          %1068 = vmatpush1.xpose.msra.mxu0 0.0
          %1069 = vmatprep.subr.mxu0 0.0
          %1070 = vmatpush1.xpose.msra.mxu0 0.0
          %1071 = vmatprep.subr.mxu0 0.0
          %1072 = vmatpush1.xpose.msra.mxu0 0.0
          %1073 = vmatprep.subr.mxu0 0.0
          %1074 = vmatpush1.xpose.msra.mxu0 0.0
          %1075 = vmatprep.subr.mxu0 0.0
          %1076 = vmatpush1.xpose.msra.mxu0 0.0
          %1077 = vmatprep.subr.mxu0 0.0
          %1078 = vmatpush1.xpose.msra.mxu0 0.0
          %1079 = vmatprep.subr.mxu0 0.0
          %1080 = vmatpush1.xpose.msra.mxu0 0.0
          %1081 = vmatprep.subr.mxu0 0.0
          %1082 = vmatpush1.xpose.msra.mxu0 %v1049
          %1083 = vmatprep.subr.mxu0 0.0
          %1084 = vmatpush2.xpose.msra.mxu0 0.0
          %1085 = vmatprep.subr.mxu0 0.0
          %1086 = vmatpush2.xpose.msra.mxu0 0.0
          %1087 = vmatprep.subr.mxu0 0.0
          %1088 = vmatpush2.xpose.msra.mxu0 0.0
          %1089 = vmatprep.subr.mxu0 0.0
          %1090 = vmatpush2.xpose.msra.mxu0 0.0
          %1091 = vmatprep.subr.mxu0 0.0
          %1092 = vmatpush2.xpose.msra.mxu0 0.0
          %1093 = vmatprep.subr.mxu0 0.0
          %1094 = vmatpush2.xpose.msra.mxu0 0.0
          %1095 = vmatprep.subr.mxu0 0.0
          %1096 = vmatpush2.xpose.msra.mxu0 0.0
          %1097 = vmatprep.subr.mxu0 0.0
          %1098 = vmatpush2.xpose.msra.mxu0 0.0
          %1099 = vmatprep.subr.mxu0 0.0
          %1100 = vmatpush2.xpose.msra.mxu0 0.0
          %1101 = vmatprep.subr.mxu0 0.0
          %1102 = vmatpush2.xpose.msra.mxu0 0.0
          %1103 = vmatprep.subr.mxu0 0.0
          %1104 = vmatpush2.xpose.msra.mxu0 0.0
          %1105 = vmatprep.subr.mxu0 0.0
          %1106 = vmatpush2.xpose.msra.mxu0 0.0
          %1107 = vmatprep.subr.mxu0 0.0
          %1108 = vmatpush2.xpose.msra.mxu0 0.0
          %1109 = vmatprep.subr.mxu0 0.0
          %1110 = vmatpush2.xpose.msra.mxu0 0.0
          %1111 = vmatprep.subr.mxu0 0.0
          %1112 = vmatpush2.xpose.msra.mxu0 0.0
          %1113 = vmatprep.subr.mxu0 0.0
          %1114 = vmatpush2.xpose.msra.mxu0 0.0
          %1115 = vmatprep.mubr.f32.mxu0 0.0
          %1116 = vmatmul.mubr.f32.gmra.mxu0 %v1046
          %v1117 = vpop.f32.mrf.mxu0
          %v1118 = vadd.f32 0.0, %v1117
          %v1119 = vpop.f32.mrf.mxu0
          %1120 = vdwg.mxu0
          %v1121 = vstv %s1037
          %v1122 = vadd.s32 %v1121, %v834
          %vm1123 = vcmp.ge.s32.totalorder %v832, %v1122
          %v1124 = vsel %vm1123, %v1118, -inf
          %v1125 = vsel %vm1026, %v1124, -inf
          %1126 = vmax.xlane.f32.xlu0 %v1125
          %v1127 = vpop.xlane.xlu0 %1126
          %v1128 = vmax.f32 %v1034, %v1127
          %v1129 = vsub.f32 %v1034, %v1128
          %v1130 = vmul.f32 %v1129, 1.442695
          %v1131 = vpow.pop %v1130
          %v1132 = vsub.f32 %v1124, %v1128
          %v1133 = vmul.f32 %v1132, 1.442695
          %v1134 = vpow.pop %v1133
          %v1135 = vmul.f32 %v1131, %v1035
          %v1136 = vsel %vm1026, %v1134, 0.0
          %1137 = vadd.xlane.f32.xlu0 %v1136
          %v1138 = vpop.xlane.xlu0 %1137
          %v1139 = vadd.f32 %v1135, %v1138
          %v1140 = vmul.f32 %v1131, %v1036
          %v1142 = vsel %vm1026, %v1134, 0
          %1144 = vmatprep.subr.mxu0 0.0
          %1145 = vmatpush1.msra.mxu0 0.0
          %1146 = vmatprep.subr.mxu0 0.0
          %1147 = vmatpush1.msra.mxu0 0.0
          %1148 = vmatprep.subr.mxu0 0.0
          %1149 = vmatpush1.msra.mxu0 0.0
          %1150 = vmatprep.subr.mxu0 0.0
          %1151 = vmatpush1.msra.mxu0 0.0
          %1152 = vmatprep.subr.mxu0 0.0
          %1153 = vmatpush1.msra.mxu0 0.0
          %1154 = vmatprep.subr.mxu0 0.0
          %1155 = vmatpush1.msra.mxu0 0.0
          %1156 = vmatprep.subr.mxu0 0.0
          %1157 = vmatpush1.msra.mxu0 0.0
          %1158 = vmatprep.subr.mxu0 0.0
          %1159 = vmatpush1.msra.mxu0 0.0
          %1160 = vmatprep.subr.mxu0 0.0
          %1161 = vmatpush1.msra.mxu0 0.0
          %1162 = vmatprep.subr.mxu0 0.0
          %1163 = vmatpush1.msra.mxu0 0.0
          %1164 = vmatprep.subr.mxu0 0.0
          %1165 = vmatpush1.msra.mxu0 0.0
          %1166 = vmatprep.subr.mxu0 0.0
          %1167 = vmatpush1.msra.mxu0 0.0
          %1168 = vmatprep.subr.mxu0 0.0
          %1169 = vmatpush1.msra.mxu0 0.0
          %1170 = vmatprep.subr.mxu0 0.0
          %1171 = vmatpush1.msra.mxu0 0.0
          %1172 = vmatprep.subr.mxu0 0.0
          %1173 = vmatpush1.msra.mxu0 0.0
          %1174 = vmatprep.subr.mxu0 0.0
          %1175 = vmatpush1.msra.mxu0 %v1042
          %1176 = vmatprep.subr.mxu0 0.0
          %1177 = vmatpush2.msra.mxu0 0.0
          %1178 = vmatprep.subr.mxu0 0.0
          %1179 = vmatpush2.msra.mxu0 0.0
          %1180 = vmatprep.subr.mxu0 0.0
          %1181 = vmatpush2.msra.mxu0 0.0
          %1182 = vmatprep.subr.mxu0 0.0
          %1183 = vmatpush2.msra.mxu0 0.0
          %1184 = vmatprep.subr.mxu0 0.0
          %1185 = vmatpush2.msra.mxu0 0.0
          %1186 = vmatprep.subr.mxu0 0.0
          %1187 = vmatpush2.msra.mxu0 0.0
          %1188 = vmatprep.subr.mxu0 0.0
          %1189 = vmatpush2.msra.mxu0 0.0
          %1190 = vmatprep.subr.mxu0 0.0
          %1191 = vmatpush2.msra.mxu0 0.0
          %1192 = vmatprep.subr.mxu0 0.0
          %1193 = vmatpush2.msra.mxu0 0.0
          %1194 = vmatprep.subr.mxu0 0.0
          %1195 = vmatpush2.msra.mxu0 0.0
          %1196 = vmatprep.subr.mxu0 0.0
          %1197 = vmatpush2.msra.mxu0 0.0
          %1198 = vmatprep.subr.mxu0 0.0
          %1199 = vmatpush2.msra.mxu0 0.0
          %1200 = vmatprep.subr.mxu0 0.0
          %1201 = vmatpush2.msra.mxu0 0.0
          %1202 = vmatprep.subr.mxu0 0.0
          %1203 = vmatpush2.msra.mxu0 0.0
          %1204 = vmatprep.subr.mxu0 0.0
          %1205 = vmatpush2.msra.mxu0 0.0
          %1206 = vmatprep.subr.mxu0 0.0
          %1207 = vmatpush2.msra.mxu0 0.0
          %1208 = vmatprep.mubr.f32.mxu0 0.0
          %1209 = vmatmul.mubr.f32.gmra.mxu0 %v1142
          %v1210 = vpop.f32.mrf.mxu0
          %v1211 = vadd.f32 0.0, %v1210
          %v1212 = vpop.f32.mrf.mxu0
          %1213 = vdwg.mxu0
          %v1214 = vadd.f32 %v1140, %v1211
        $region100: #{tpu_custom_call.1} parent=79 // loop_footer
          %s1031 = sadd.s32 %s1029, 1
        $region101: #{tpu_custom_call.1} parent=79 // loop_footer_branch
          %1028 = sbr.rel target = $region97
        $region102: #{tpu_custom_call.1} parent=79 // loop_exit
          _
        %v1215 = vrcp.pop %v1035
        %v1216 = vmul.f32 %v1035, %v1215
        %v1217 = vsub.f32 2.0, %v1216
        %v1218 = vmul.f32 %v1215, %v1217
        %v1219 = vmul.f32 %v1036, %v1218
        %1221 = vrot.lane.b32.xlu0 %v1219, 8
        %v1222 = vpop.permute.xlu0 %1221
        %vm1224 = vcmask 130112
        %1225 = vst.msk [vmem:[#allocation4] sm:$0xff] %vm1224, %v1222
        // While loop
        $region103: #{tpu_custom_call.1} parent=79 // loop_pre_header
          _
        $region104: #{tpu_custom_call.1} parent=79 // loop_header
          %s1227 = sphi 0, %s1229
          %p1228 = scmp.ge.s32.totalorder %s1227, %s835
          %v1232 = vphi -inf, %v1325
          %v1233 = vphi 0.0, %v1336
          %v1234 = vphi 0.0, %v1411
        $region105: #{tpu_custom_call.1} parent=79 // loop_header_branch
          %1231 = sbr.rel (%p1228) target = $region109
        $region106: #{tpu_custom_call.1} parent=79 // loop_body
          %s1235 = smul.u32 %s1227, 8
          %s1236 = scalar_lea.vmem [#allocation2], %s1235
          %v1237 = vld [vmem:[%s1236] sm:$0xff]
          %s1238 = scalar_lea.vmem [#allocation3], %s1235
          %v1239 = vld [vmem:[%s1238] sm:$0xff]
          %1241 = vrot.lane.b32.xlu0 %v828, 112
          %v1242 = vpop.permute.xlu0 %1241
          %v1243 = vsel %vm1026, %v1242, 0
          %v1246 = vsel %vm1026, %v1237, 0
          %1248 = vmatprep.subr.mxu0 0.0
          %1249 = vmatpush1.xpose.msra.mxu0 0.0
          %1250 = vmatprep.subr.mxu0 0.0
          %1251 = vmatpush1.xpose.msra.mxu0 0.0
          %1252 = vmatprep.subr.mxu0 0.0
          %1253 = vmatpush1.xpose.msra.mxu0 0.0
          %1254 = vmatprep.subr.mxu0 0.0
          %1255 = vmatpush1.xpose.msra.mxu0 0.0
          %1256 = vmatprep.subr.mxu0 0.0
          %1257 = vmatpush1.xpose.msra.mxu0 0.0
          %1258 = vmatprep.subr.mxu0 0.0
          %1259 = vmatpush1.xpose.msra.mxu0 0.0
          %1260 = vmatprep.subr.mxu0 0.0
          %1261 = vmatpush1.xpose.msra.mxu0 0.0
          %1262 = vmatprep.subr.mxu0 0.0
          %1263 = vmatpush1.xpose.msra.mxu0 0.0
          %1264 = vmatprep.subr.mxu0 0.0
          %1265 = vmatpush1.xpose.msra.mxu0 0.0
          %1266 = vmatprep.subr.mxu0 0.0
          %1267 = vmatpush1.xpose.msra.mxu0 0.0
          %1268 = vmatprep.subr.mxu0 0.0
          %1269 = vmatpush1.xpose.msra.mxu0 0.0
          %1270 = vmatprep.subr.mxu0 0.0
          %1271 = vmatpush1.xpose.msra.mxu0 0.0
          %1272 = vmatprep.subr.mxu0 0.0
          %1273 = vmatpush1.xpose.msra.mxu0 0.0
          %1274 = vmatprep.subr.mxu0 0.0
          %1275 = vmatpush1.xpose.msra.mxu0 0.0
          %1276 = vmatprep.subr.mxu0 0.0
          %1277 = vmatpush1.xpose.msra.mxu0 0.0
          %1278 = vmatprep.subr.mxu0 0.0
          %1279 = vmatpush1.xpose.msra.mxu0 %v1246
          %1280 = vmatprep.subr.mxu0 0.0
          %1281 = vmatpush2.xpose.msra.mxu0 0.0
          %1282 = vmatprep.subr.mxu0 0.0
          %1283 = vmatpush2.xpose.msra.mxu0 0.0
          %1284 = vmatprep.subr.mxu0 0.0
          %1285 = vmatpush2.xpose.msra.mxu0 0.0
          %1286 = vmatprep.subr.mxu0 0.0
          %1287 = vmatpush2.xpose.msra.mxu0 0.0
          %1288 = vmatprep.subr.mxu0 0.0
          %1289 = vmatpush2.xpose.msra.mxu0 0.0
          %1290 = vmatprep.subr.mxu0 0.0
          %1291 = vmatpush2.xpose.msra.mxu0 0.0
          %1292 = vmatprep.subr.mxu0 0.0
          %1293 = vmatpush2.xpose.msra.mxu0 0.0
          %1294 = vmatprep.subr.mxu0 0.0
          %1295 = vmatpush2.xpose.msra.mxu0 0.0
          %1296 = vmatprep.subr.mxu0 0.0
          %1297 = vmatpush2.xpose.msra.mxu0 0.0
          %1298 = vmatprep.subr.mxu0 0.0
          %1299 = vmatpush2.xpose.msra.mxu0 0.0
          %1300 = vmatprep.subr.mxu0 0.0
          %1301 = vmatpush2.xpose.msra.mxu0 0.0
          %1302 = vmatprep.subr.mxu0 0.0
          %1303 = vmatpush2.xpose.msra.mxu0 0.0
          %1304 = vmatprep.subr.mxu0 0.0
          %1305 = vmatpush2.xpose.msra.mxu0 0.0
          %1306 = vmatprep.subr.mxu0 0.0
          %1307 = vmatpush2.xpose.msra.mxu0 0.0
          %1308 = vmatprep.subr.mxu0 0.0
          %1309 = vmatpush2.xpose.msra.mxu0 0.0
          %1310 = vmatprep.subr.mxu0 0.0
          %1311 = vmatpush2.xpose.msra.mxu0 0.0
          %1312 = vmatprep.mubr.f32.mxu0 0.0
          %1313 = vmatmul.mubr.f32.gmra.mxu0 %v1243
          %v1314 = vpop.f32.mrf.mxu0
          %v1315 = vadd.f32 0.0, %v1314
          %v1316 = vpop.f32.mrf.mxu0
          %1317 = vdwg.mxu0
          %v1318 = vstv %s1235
          %v1319 = vadd.s32 %v1318, %v834
          %vm1320 = vcmp.ge.s32.totalorder %v832, %v1319
          %v1321 = vsel %vm1320, %v1315, -inf
          %v1322 = vsel %vm1026, %v1321, -inf
          %1323 = vmax.xlane.f32.xlu0 %v1322
          %v1324 = vpop.xlane.xlu0 %1323
          %v1325 = vmax.f32 %v1232, %v1324
          %v1326 = vsub.f32 %v1232, %v1325
          %v1327 = vmul.f32 %v1326, 1.442695
          %v1328 = vpow.pop %v1327
          %v1329 = vsub.f32 %v1321, %v1325
          %v1330 = vmul.f32 %v1329, 1.442695
          %v1331 = vpow.pop %v1330
          %v1332 = vmul.f32 %v1328, %v1233
          %v1333 = vsel %vm1026, %v1331, 0.0
          %1334 = vadd.xlane.f32.xlu0 %v1333
          %v1335 = vpop.xlane.xlu0 %1334
          %v1336 = vadd.f32 %v1332, %v1335
          %v1337 = vmul.f32 %v1328, %v1234
          %v1339 = vsel %vm1026, %v1331, 0
          %1341 = vmatprep.subr.mxu0 0.0
          %1342 = vmatpush1.msra.mxu0 0.0
          %1343 = vmatprep.subr.mxu0 0.0
          %1344 = vmatpush1.msra.mxu0 0.0
          %1345 = vmatprep.subr.mxu0 0.0
          %1346 = vmatpush1.msra.mxu0 0.0
          %1347 = vmatprep.subr.mxu0 0.0
          %1348 = vmatpush1.msra.mxu0 0.0
          %1349 = vmatprep.subr.mxu0 0.0
          %1350 = vmatpush1.msra.mxu0 0.0
          %1351 = vmatprep.subr.mxu0 0.0
          %1352 = vmatpush1.msra.mxu0 0.0
          %1353 = vmatprep.subr.mxu0 0.0
          %1354 = vmatpush1.msra.mxu0 0.0
          %1355 = vmatprep.subr.mxu0 0.0
          %1356 = vmatpush1.msra.mxu0 0.0
          %1357 = vmatprep.subr.mxu0 0.0
          %1358 = vmatpush1.msra.mxu0 0.0
          %1359 = vmatprep.subr.mxu0 0.0
          %1360 = vmatpush1.msra.mxu0 0.0
          %1361 = vmatprep.subr.mxu0 0.0
          %1362 = vmatpush1.msra.mxu0 0.0
          %1363 = vmatprep.subr.mxu0 0.0
          %1364 = vmatpush1.msra.mxu0 0.0
          %1365 = vmatprep.subr.mxu0 0.0
          %1366 = vmatpush1.msra.mxu0 0.0
          %1367 = vmatprep.subr.mxu0 0.0
          %1368 = vmatpush1.msra.mxu0 0.0
          %1369 = vmatprep.subr.mxu0 0.0
          %1370 = vmatpush1.msra.mxu0 0.0
          %1371 = vmatprep.subr.mxu0 0.0
          %1372 = vmatpush1.msra.mxu0 %v1239
          %1373 = vmatprep.subr.mxu0 0.0
          %1374 = vmatpush2.msra.mxu0 0.0
          %1375 = vmatprep.subr.mxu0 0.0
          %1376 = vmatpush2.msra.mxu0 0.0
          %1377 = vmatprep.subr.mxu0 0.0
          %1378 = vmatpush2.msra.mxu0 0.0
          %1379 = vmatprep.subr.mxu0 0.0
          %1380 = vmatpush2.msra.mxu0 0.0
          %1381 = vmatprep.subr.mxu0 0.0
          %1382 = vmatpush2.msra.mxu0 0.0
          %1383 = vmatprep.subr.mxu0 0.0
          %1384 = vmatpush2.msra.mxu0 0.0
          %1385 = vmatprep.subr.mxu0 0.0
          %1386 = vmatpush2.msra.mxu0 0.0
          %1387 = vmatprep.subr.mxu0 0.0
          %1388 = vmatpush2.msra.mxu0 0.0
          %1389 = vmatprep.subr.mxu0 0.0
          %1390 = vmatpush2.msra.mxu0 0.0
          %1391 = vmatprep.subr.mxu0 0.0
          %1392 = vmatpush2.msra.mxu0 0.0
          %1393 = vmatprep.subr.mxu0 0.0
          %1394 = vmatpush2.msra.mxu0 0.0
          %1395 = vmatprep.subr.mxu0 0.0
          %1396 = vmatpush2.msra.mxu0 0.0
          %1397 = vmatprep.subr.mxu0 0.0
          %1398 = vmatpush2.msra.mxu0 0.0
          %1399 = vmatprep.subr.mxu0 0.0
          %1400 = vmatpush2.msra.mxu0 0.0
          %1401 = vmatprep.subr.mxu0 0.0
          %1402 = vmatpush2.msra.mxu0 0.0
          %1403 = vmatprep.subr.mxu0 0.0
          %1404 = vmatpush2.msra.mxu0 0.0
          %1405 = vmatprep.mubr.f32.mxu0 0.0
          %1406 = vmatmul.mubr.f32.gmra.mxu0 %v1339
          %v1407 = vpop.f32.mrf.mxu0
          %v1408 = vadd.f32 0.0, %v1407
          %v1409 = vpop.f32.mrf.mxu0
          %1410 = vdwg.mxu0
          %v1411 = vadd.f32 %v1337, %v1408
        $region107: #{tpu_custom_call.1} parent=79 // loop_footer
          %s1229 = sadd.s32 %s1227, 1
        $region108: #{tpu_custom_call.1} parent=79 // loop_footer_branch
          %1226 = sbr.rel target = $region104
        $region109: #{tpu_custom_call.1} parent=79 // loop_exit
          _
        %v1412 = vrcp.pop %v1233
        %v1413 = vmul.f32 %v1233, %v1412
        %v1414 = vsub.f32 2.0, %v1413
        %v1415 = vmul.f32 %v1412, %v1414
        %v1416 = vmul.f32 %v1234, %v1415
        %1418 = vrot.lane.b32.xlu0 %v1416, 16
        %v1419 = vpop.permute.xlu0 %1418
        %vm1421 = vcmask 195712
        %1422 = vst.msk [vmem:[#allocation4] sm:$0xff] %vm1421, %v1419
        // While loop
        $region110: #{tpu_custom_call.1} parent=79 // loop_pre_header
          _
        $region111: #{tpu_custom_call.1} parent=79 // loop_header
          %s1424 = sphi 0, %s1426
          %p1425 = scmp.ge.s32.totalorder %s1424, %s835
          %v1429 = vphi -inf, %v1523
          %v1430 = vphi 0.0, %v1534
          %v1431 = vphi 0.0, %v1609
        $region112: #{tpu_custom_call.1} parent=79 // loop_header_branch
          %1428 = sbr.rel (%p1425) target = $region116
        $region113: #{tpu_custom_call.1} parent=79 // loop_body
          %s1432 = smul.u32 %s1424, 8
          %s1433 = sadd.s32 %s1432, 8
          %s1434 = scalar_lea.vmem [#allocation2], %s1433
          %v1435 = vld [vmem:[%s1434] sm:$0xff]
          %s1436 = scalar_lea.vmem [#allocation3], %s1433
          %v1437 = vld [vmem:[%s1436] sm:$0xff]
          %1439 = vrot.lane.b32.xlu0 %v828, 104
          %v1440 = vpop.permute.xlu0 %1439
          %v1441 = vsel %vm1026, %v1440, 0
          %v1444 = vsel %vm1026, %v1435, 0
          %1446 = vmatprep.subr.mxu0 0.0
          %1447 = vmatpush1.xpose.msra.mxu0 0.0
          %1448 = vmatprep.subr.mxu0 0.0
          %1449 = vmatpush1.xpose.msra.mxu0 0.0
          %1450 = vmatprep.subr.mxu0 0.0
          %1451 = vmatpush1.xpose.msra.mxu0 0.0
          %1452 = vmatprep.subr.mxu0 0.0
          %1453 = vmatpush1.xpose.msra.mxu0 0.0
          %1454 = vmatprep.subr.mxu0 0.0
          %1455 = vmatpush1.xpose.msra.mxu0 0.0
          %1456 = vmatprep.subr.mxu0 0.0
          %1457 = vmatpush1.xpose.msra.mxu0 0.0
          %1458 = vmatprep.subr.mxu0 0.0
          %1459 = vmatpush1.xpose.msra.mxu0 0.0
          %1460 = vmatprep.subr.mxu0 0.0
          %1461 = vmatpush1.xpose.msra.mxu0 0.0
          %1462 = vmatprep.subr.mxu0 0.0
          %1463 = vmatpush1.xpose.msra.mxu0 0.0
          %1464 = vmatprep.subr.mxu0 0.0
          %1465 = vmatpush1.xpose.msra.mxu0 0.0
          %1466 = vmatprep.subr.mxu0 0.0
          %1467 = vmatpush1.xpose.msra.mxu0 0.0
          %1468 = vmatprep.subr.mxu0 0.0
          %1469 = vmatpush1.xpose.msra.mxu0 0.0
          %1470 = vmatprep.subr.mxu0 0.0
          %1471 = vmatpush1.xpose.msra.mxu0 0.0
          %1472 = vmatprep.subr.mxu0 0.0
          %1473 = vmatpush1.xpose.msra.mxu0 0.0
          %1474 = vmatprep.subr.mxu0 0.0
          %1475 = vmatpush1.xpose.msra.mxu0 0.0
          %1476 = vmatprep.subr.mxu0 0.0
          %1477 = vmatpush1.xpose.msra.mxu0 %v1444
          %1478 = vmatprep.subr.mxu0 0.0
          %1479 = vmatpush2.xpose.msra.mxu0 0.0
          %1480 = vmatprep.subr.mxu0 0.0
          %1481 = vmatpush2.xpose.msra.mxu0 0.0
          %1482 = vmatprep.subr.mxu0 0.0
          %1483 = vmatpush2.xpose.msra.mxu0 0.0
          %1484 = vmatprep.subr.mxu0 0.0
          %1485 = vmatpush2.xpose.msra.mxu0 0.0
          %1486 = vmatprep.subr.mxu0 0.0
          %1487 = vmatpush2.xpose.msra.mxu0 0.0
          %1488 = vmatprep.subr.mxu0 0.0
          %1489 = vmatpush2.xpose.msra.mxu0 0.0
          %1490 = vmatprep.subr.mxu0 0.0
          %1491 = vmatpush2.xpose.msra.mxu0 0.0
          %1492 = vmatprep.subr.mxu0 0.0
          %1493 = vmatpush2.xpose.msra.mxu0 0.0
          %1494 = vmatprep.subr.mxu0 0.0
          %1495 = vmatpush2.xpose.msra.mxu0 0.0
          %1496 = vmatprep.subr.mxu0 0.0
          %1497 = vmatpush2.xpose.msra.mxu0 0.0
          %1498 = vmatprep.subr.mxu0 0.0
          %1499 = vmatpush2.xpose.msra.mxu0 0.0
          %1500 = vmatprep.subr.mxu0 0.0
          %1501 = vmatpush2.xpose.msra.mxu0 0.0
          %1502 = vmatprep.subr.mxu0 0.0
          %1503 = vmatpush2.xpose.msra.mxu0 0.0
          %1504 = vmatprep.subr.mxu0 0.0
          %1505 = vmatpush2.xpose.msra.mxu0 0.0
          %1506 = vmatprep.subr.mxu0 0.0
          %1507 = vmatpush2.xpose.msra.mxu0 0.0
          %1508 = vmatprep.subr.mxu0 0.0
          %1509 = vmatpush2.xpose.msra.mxu0 0.0
          %1510 = vmatprep.mubr.f32.mxu0 0.0
          %1511 = vmatmul.mubr.f32.gmra.mxu0 %v1441
          %v1512 = vpop.f32.mrf.mxu0
          %v1513 = vadd.f32 0.0, %v1512
          %v1514 = vpop.f32.mrf.mxu0
          %1515 = vdwg.mxu0
          %v1516 = vstv %s1432
          %v1517 = vadd.s32 %v1516, %v834
          %vm1518 = vcmp.ge.s32.totalorder %v832, %v1517
          %v1519 = vsel %vm1518, %v1513, -inf
          %v1520 = vsel %vm1026, %v1519, -inf
          %1521 = vmax.xlane.f32.xlu0 %v1520
          %v1522 = vpop.xlane.xlu0 %1521
          %v1523 = vmax.f32 %v1429, %v1522
          %v1524 = vsub.f32 %v1429, %v1523
          %v1525 = vmul.f32 %v1524, 1.442695
          %v1526 = vpow.pop %v1525
          %v1527 = vsub.f32 %v1519, %v1523
          %v1528 = vmul.f32 %v1527, 1.442695
          %v1529 = vpow.pop %v1528
          %v1530 = vmul.f32 %v1526, %v1430
          %v1531 = vsel %vm1026, %v1529, 0.0
          %1532 = vadd.xlane.f32.xlu0 %v1531
          %v1533 = vpop.xlane.xlu0 %1532
          %v1534 = vadd.f32 %v1530, %v1533
          %v1535 = vmul.f32 %v1526, %v1431
          %v1537 = vsel %vm1026, %v1529, 0
          %1539 = vmatprep.subr.mxu0 0.0
          %1540 = vmatpush1.msra.mxu0 0.0
          %1541 = vmatprep.subr.mxu0 0.0
          %1542 = vmatpush1.msra.mxu0 0.0
          %1543 = vmatprep.subr.mxu0 0.0
          %1544 = vmatpush1.msra.mxu0 0.0
          %1545 = vmatprep.subr.mxu0 0.0
          %1546 = vmatpush1.msra.mxu0 0.0
          %1547 = vmatprep.subr.mxu0 0.0
          %1548 = vmatpush1.msra.mxu0 0.0
          %1549 = vmatprep.subr.mxu0 0.0
          %1550 = vmatpush1.msra.mxu0 0.0
          %1551 = vmatprep.subr.mxu0 0.0
          %1552 = vmatpush1.msra.mxu0 0.0
          %1553 = vmatprep.subr.mxu0 0.0
          %1554 = vmatpush1.msra.mxu0 0.0
          %1555 = vmatprep.subr.mxu0 0.0
          %1556 = vmatpush1.msra.mxu0 0.0
          %1557 = vmatprep.subr.mxu0 0.0
          %1558 = vmatpush1.msra.mxu0 0.0
          %1559 = vmatprep.subr.mxu0 0.0
          %1560 = vmatpush1.msra.mxu0 0.0
          %1561 = vmatprep.subr.mxu0 0.0
          %1562 = vmatpush1.msra.mxu0 0.0
          %1563 = vmatprep.subr.mxu0 0.0
          %1564 = vmatpush1.msra.mxu0 0.0
          %1565 = vmatprep.subr.mxu0 0.0
          %1566 = vmatpush1.msra.mxu0 0.0
          %1567 = vmatprep.subr.mxu0 0.0
          %1568 = vmatpush1.msra.mxu0 0.0
          %1569 = vmatprep.subr.mxu0 0.0
          %1570 = vmatpush1.msra.mxu0 %v1437
          %1571 = vmatprep.subr.mxu0 0.0
          %1572 = vmatpush2.msra.mxu0 0.0
          %1573 = vmatprep.subr.mxu0 0.0
          %1574 = vmatpush2.msra.mxu0 0.0
          %1575 = vmatprep.subr.mxu0 0.0
          %1576 = vmatpush2.msra.mxu0 0.0
          %1577 = vmatprep.subr.mxu0 0.0
          %1578 = vmatpush2.msra.mxu0 0.0
          %1579 = vmatprep.subr.mxu0 0.0
          %1580 = vmatpush2.msra.mxu0 0.0
          %1581 = vmatprep.subr.mxu0 0.0
          %1582 = vmatpush2.msra.mxu0 0.0
          %1583 = vmatprep.subr.mxu0 0.0
          %1584 = vmatpush2.msra.mxu0 0.0
          %1585 = vmatprep.subr.mxu0 0.0
          %1586 = vmatpush2.msra.mxu0 0.0
          %1587 = vmatprep.subr.mxu0 0.0
          %1588 = vmatpush2.msra.mxu0 0.0
          %1589 = vmatprep.subr.mxu0 0.0
          %1590 = vmatpush2.msra.mxu0 0.0
          %1591 = vmatprep.subr.mxu0 0.0
          %1592 = vmatpush2.msra.mxu0 0.0
          %1593 = vmatprep.subr.mxu0 0.0
          %1594 = vmatpush2.msra.mxu0 0.0
          %1595 = vmatprep.subr.mxu0 0.0
          %1596 = vmatpush2.msra.mxu0 0.0
          %1597 = vmatprep.subr.mxu0 0.0
          %1598 = vmatpush2.msra.mxu0 0.0
          %1599 = vmatprep.subr.mxu0 0.0
          %1600 = vmatpush2.msra.mxu0 0.0
          %1601 = vmatprep.subr.mxu0 0.0
          %1602 = vmatpush2.msra.mxu0 0.0
          %1603 = vmatprep.mubr.f32.mxu0 0.0
          %1604 = vmatmul.mubr.f32.gmra.mxu0 %v1537
          %v1605 = vpop.f32.mrf.mxu0
          %v1606 = vadd.f32 0.0, %v1605
          %v1607 = vpop.f32.mrf.mxu0
          %1608 = vdwg.mxu0
          %v1609 = vadd.f32 %v1535, %v1606
        $region114: #{tpu_custom_call.1} parent=79 // loop_footer
          %s1426 = sadd.s32 %s1424, 1
        $region115: #{tpu_custom_call.1} parent=79 // loop_footer_branch
          %1423 = sbr.rel target = $region111
        $region116: #{tpu_custom_call.1} parent=79 // loop_exit
          _
        %v1610 = vrcp.pop %v1430
        %v1611 = vmul.f32 %v1430, %v1610
        %v1612 = vsub.f32 2.0, %v1611
        %v1613 = vmul.f32 %v1610, %v1612
        %v1614 = vmul.f32 %v1431, %v1613
        %1616 = vrot.lane.b32.xlu0 %v1614, 24
        %v1617 = vpop.permute.xlu0 %1616
        %vm1619 = vcmask 261312
        %1620 = vst.msk [vmem:[#allocation4] sm:$0xff] %vm1619, %v1617
        %v1621 = vld [vmem:[#allocation4] sm:$0xff]
        %v1622 = vld [vmem:[%s4] sm:$0xff]
        %v1623 = vld [vmem:[%s4 + $0x8] sm:$0xff]
        %v1624 = vld [vmem:[%s4 + $0x10] sm:$0xff]
        %v1625 = vld [vmem:[%s4 + $0x18] sm:$0xff]
        %v1627 = vsel %vm734, %v1621, 0
        %1629 = vmatprep.subr.mxu0 0.0
        %1630 = vmatpush1.msra.mxu0 0.0
        %1631 = vmatprep.subr.mxu0 0.0
        %1632 = vmatpush1.msra.mxu0 0.0
        %1633 = vmatprep.subr.mxu0 0.0
        %1634 = vmatpush1.msra.mxu0 0.0
        %1635 = vmatprep.subr.mxu0 0.0
        %1636 = vmatpush1.msra.mxu0 0.0
        %1637 = vmatprep.subr.mxu0 0.0
        %1638 = vmatpush1.msra.mxu0 0.0
        %1639 = vmatprep.subr.mxu0 0.0
        %1640 = vmatpush1.msra.mxu0 0.0
        %1641 = vmatprep.subr.mxu0 0.0
        %1642 = vmatpush1.msra.mxu0 0.0
        %1643 = vmatprep.subr.mxu0 0.0
        %1644 = vmatpush1.msra.mxu0 0.0
        %1645 = vmatprep.subr.mxu0 0.0
        %1646 = vmatpush1.msra.mxu0 0.0
        %1647 = vmatprep.subr.mxu0 0.0
        %1648 = vmatpush1.msra.mxu0 0.0
        %1649 = vmatprep.subr.mxu0 0.0
        %1650 = vmatpush1.msra.mxu0 0.0
        %1651 = vmatprep.subr.mxu0 0.0
        %1652 = vmatpush1.msra.mxu0 0.0
        %1653 = vmatprep.subr.mxu0 0.0
        %1654 = vmatpush1.msra.mxu0 %v1625
        %1655 = vmatprep.subr.mxu0 0.0
        %1656 = vmatpush1.msra.mxu0 %v1624
        %1657 = vmatprep.subr.mxu0 0.0
        %1658 = vmatpush1.msra.mxu0 %v1623
        %1659 = vmatprep.subr.mxu0 0.0
        %1660 = vmatpush1.msra.mxu0 %v1622
        %1661 = vmatprep.subr.mxu0 0.0
        %1662 = vmatpush2.msra.mxu0 0.0
        %1663 = vmatprep.subr.mxu0 0.0
        %1664 = vmatpush2.msra.mxu0 0.0
        %1665 = vmatprep.subr.mxu0 0.0
        %1666 = vmatpush2.msra.mxu0 0.0
        %1667 = vmatprep.subr.mxu0 0.0
        %1668 = vmatpush2.msra.mxu0 0.0
        %1669 = vmatprep.subr.mxu0 0.0
        %1670 = vmatpush2.msra.mxu0 0.0
        %1671 = vmatprep.subr.mxu0 0.0
        %1672 = vmatpush2.msra.mxu0 0.0
        %1673 = vmatprep.subr.mxu0 0.0
        %1674 = vmatpush2.msra.mxu0 0.0
        %1675 = vmatprep.subr.mxu0 0.0
        %1676 = vmatpush2.msra.mxu0 0.0
        %1677 = vmatprep.subr.mxu0 0.0
        %1678 = vmatpush2.msra.mxu0 0.0
        %1679 = vmatprep.subr.mxu0 0.0
        %1680 = vmatpush2.msra.mxu0 0.0
        %1681 = vmatprep.subr.mxu0 0.0
        %1682 = vmatpush2.msra.mxu0 0.0
        %1683 = vmatprep.subr.mxu0 0.0
        %1684 = vmatpush2.msra.mxu0 0.0
        %1685 = vmatprep.subr.mxu0 0.0
        %1686 = vmatpush2.msra.mxu0 0.0
        %1687 = vmatprep.subr.mxu0 0.0
        %1688 = vmatpush2.msra.mxu0 0.0
        %1689 = vmatprep.subr.mxu0 0.0
        %1690 = vmatpush2.msra.mxu0 0.0
        %1691 = vmatprep.subr.mxu0 0.0
        %1692 = vmatpush2.msra.mxu0 0.0
        %1693 = vmatprep.mubr.f32.mxu0 0.0
        %1694 = vmatmul.mubr.f32.gmra.mxu0 %v1627
        %v1695 = vpop.f32.mrf.mxu0
        %v1696 = vadd.f32 0.0, %v1695
        %v1697 = vpop.f32.mrf.mxu0
        %1698 = vdwg.mxu0
        %v1699 = vadd.f32 %v732, %v1696
        %v1700 = vld [vmem:[%s14] sm:$0x1]
        %v1701 = vmul.f32 %v1699, %v1699
        %v1702 = vsel %vm734, %v1701, 0.0
        %1703 = vadd.xlane.f32.xlu0 %v1702
        %v1704 = vpop.xlane.xlu0 %1703
        %v1705 = vmul.f32 %v1704, %v738
        %v1706 = vadd.f32 %v1705, 1.1920929e-07
        %v1707 = vrsqrt.pop %v1706
        %v1708 = vmul.f32 %v1699, %v1707
        %v1710 = vlaneseq
        %v1711 = vshrl.u32 %v1710, 7
        %v1712 = vsub.s32 0, %v1711
        %v1713 = vrot.slane %v1700, %v1712
        %v1715 = vmul.f32 %v1708, %v1713
        %v1716 = vld [vmem:[%s8] sm:$0xff]
        %v1717 = vld [vmem:[%s8 + $0x8] sm:$0xff]
        %v1718 = vld [vmem:[%s8 + $0x10] sm:$0xff]
        %v1719 = vld [vmem:[%s8 + $0x18] sm:$0xff]
        %v1720 = vld [vmem:[%s9] sm:$0x1]
        %v1722 = vlaneseq
        %v1723 = vshrl.u32 %v1722, 7
        %v1724 = vsub.s32 0, %v1723
        %v1725 = vrot.slane %v1720, %v1724
        %v1728 = vsel %vm734, %v1715, 0
        %1730 = vmatprep.subr.mxu0 0.0
        %1731 = vmatpush1.msra.mxu0 0.0
        %1732 = vmatprep.subr.mxu0 0.0
        %1733 = vmatpush1.msra.mxu0 0.0
        %1734 = vmatprep.subr.mxu0 0.0
        %1735 = vmatpush1.msra.mxu0 0.0
        %1736 = vmatprep.subr.mxu0 0.0
        %1737 = vmatpush1.msra.mxu0 0.0
        %1738 = vmatprep.subr.mxu0 0.0
        %1739 = vmatpush1.msra.mxu0 0.0
        %1740 = vmatprep.subr.mxu0 0.0
        %1741 = vmatpush1.msra.mxu0 0.0
        %1742 = vmatprep.subr.mxu0 0.0
        %1743 = vmatpush1.msra.mxu0 0.0
        %1744 = vmatprep.subr.mxu0 0.0
        %1745 = vmatpush1.msra.mxu0 0.0
        %1746 = vmatprep.subr.mxu0 0.0
        %1747 = vmatpush1.msra.mxu0 0.0
        %1748 = vmatprep.subr.mxu0 0.0
        %1749 = vmatpush1.msra.mxu0 0.0
        %1750 = vmatprep.subr.mxu0 0.0
        %1751 = vmatpush1.msra.mxu0 0.0
        %1752 = vmatprep.subr.mxu0 0.0
        %1753 = vmatpush1.msra.mxu0 0.0
        %1754 = vmatprep.subr.mxu0 0.0
        %1755 = vmatpush1.msra.mxu0 %v1719
        %1756 = vmatprep.subr.mxu0 0.0
        %1757 = vmatpush1.msra.mxu0 %v1718
        %1758 = vmatprep.subr.mxu0 0.0
        %1759 = vmatpush1.msra.mxu0 %v1717
        %1760 = vmatprep.subr.mxu0 0.0
        %1761 = vmatpush1.msra.mxu0 %v1716
        %1762 = vmatprep.subr.mxu0 0.0
        %1763 = vmatpush2.msra.mxu0 0.0
        %1764 = vmatprep.subr.mxu0 0.0
        %1765 = vmatpush2.msra.mxu0 0.0
        %1766 = vmatprep.subr.mxu0 0.0
        %1767 = vmatpush2.msra.mxu0 0.0
        %1768 = vmatprep.subr.mxu0 0.0
        %1769 = vmatpush2.msra.mxu0 0.0
        %1770 = vmatprep.subr.mxu0 0.0
        %1771 = vmatpush2.msra.mxu0 0.0
        %1772 = vmatprep.subr.mxu0 0.0
        %1773 = vmatpush2.msra.mxu0 0.0
        %1774 = vmatprep.subr.mxu0 0.0
        %1775 = vmatpush2.msra.mxu0 0.0
        %1776 = vmatprep.subr.mxu0 0.0
        %1777 = vmatpush2.msra.mxu0 0.0
        %1778 = vmatprep.subr.mxu0 0.0
        %1779 = vmatpush2.msra.mxu0 0.0
        %1780 = vmatprep.subr.mxu0 0.0
        %1781 = vmatpush2.msra.mxu0 0.0
        %1782 = vmatprep.subr.mxu0 0.0
        %1783 = vmatpush2.msra.mxu0 0.0
        %1784 = vmatprep.subr.mxu0 0.0
        %1785 = vmatpush2.msra.mxu0 0.0
        %1786 = vmatprep.subr.mxu0 0.0
        %1787 = vmatpush2.msra.mxu0 0.0
        %1788 = vmatprep.subr.mxu0 0.0
        %1789 = vmatpush2.msra.mxu0 0.0
        %1790 = vmatprep.subr.mxu0 0.0
        %1791 = vmatpush2.msra.mxu0 0.0
        %1792 = vmatprep.subr.mxu0 0.0
        %1793 = vmatpush2.msra.mxu0 0.0
        %1794 = vmatprep.mubr.f32.mxu0 0.0
        %1795 = vmatmul.mubr.f32.gmra.mxu0 %v1728
        %v1796 = vpop.f32.mrf.mxu0
        %v1797 = vadd.f32 %v1725, %v1796
        %v1798 = vpop.f32.mrf.mxu0
        %1799 = vdwg.mxu0
        %v1800 = vld [vmem:[%s10] sm:$0xff]
        %v1801 = vld [vmem:[%s10 + $0x8] sm:$0xff]
        %v1802 = vld [vmem:[%s10 + $0x10] sm:$0xff]
        %v1803 = vld [vmem:[%s10 + $0x18] sm:$0xff]
        %v1804 = vld [vmem:[%s11] sm:$0x1]
        %v1806 = vlaneseq
        %v1807 = vshrl.u32 %v1806, 7
        %v1808 = vsub.s32 0, %v1807
        %v1809 = vrot.slane %v1804, %v1808
        %1811 = vmatprep.subr.mxu0 0.0
        %1812 = vmatpush1.msra.mxu0 0.0
        %1813 = vmatprep.subr.mxu0 0.0
        %1814 = vmatpush1.msra.mxu0 0.0
        %1815 = vmatprep.subr.mxu0 0.0
        %1816 = vmatpush1.msra.mxu0 0.0
        %1817 = vmatprep.subr.mxu0 0.0
        %1818 = vmatpush1.msra.mxu0 0.0
        %1819 = vmatprep.subr.mxu0 0.0
        %1820 = vmatpush1.msra.mxu0 0.0
        %1821 = vmatprep.subr.mxu0 0.0
        %1822 = vmatpush1.msra.mxu0 0.0
        %1823 = vmatprep.subr.mxu0 0.0
        %1824 = vmatpush1.msra.mxu0 0.0
        %1825 = vmatprep.subr.mxu0 0.0
        %1826 = vmatpush1.msra.mxu0 0.0
        %1827 = vmatprep.subr.mxu0 0.0
        %1828 = vmatpush1.msra.mxu0 0.0
        %1829 = vmatprep.subr.mxu0 0.0
        %1830 = vmatpush1.msra.mxu0 0.0
        %1831 = vmatprep.subr.mxu0 0.0
        %1832 = vmatpush1.msra.mxu0 0.0
        %1833 = vmatprep.subr.mxu0 0.0
        %1834 = vmatpush1.msra.mxu0 0.0
        %1835 = vmatprep.subr.mxu0 0.0
        %1836 = vmatpush1.msra.mxu0 %v1803
        %1837 = vmatprep.subr.mxu0 0.0
        %1838 = vmatpush1.msra.mxu0 %v1802
        %1839 = vmatprep.subr.mxu0 0.0
        %1840 = vmatpush1.msra.mxu0 %v1801
        %1841 = vmatprep.subr.mxu0 0.0
        %1842 = vmatpush1.msra.mxu0 %v1800
        %1843 = vmatprep.subr.mxu0 0.0
        %1844 = vmatpush2.msra.mxu0 0.0
        %1845 = vmatprep.subr.mxu0 0.0
        %1846 = vmatpush2.msra.mxu0 0.0
        %1847 = vmatprep.subr.mxu0 0.0
        %1848 = vmatpush2.msra.mxu0 0.0
        %1849 = vmatprep.subr.mxu0 0.0
        %1850 = vmatpush2.msra.mxu0 0.0
        %1851 = vmatprep.subr.mxu0 0.0
        %1852 = vmatpush2.msra.mxu0 0.0
        %1853 = vmatprep.subr.mxu0 0.0
        %1854 = vmatpush2.msra.mxu0 0.0
        %1855 = vmatprep.subr.mxu0 0.0
        %1856 = vmatpush2.msra.mxu0 0.0
        %1857 = vmatprep.subr.mxu0 0.0
        %1858 = vmatpush2.msra.mxu0 0.0
        %1859 = vmatprep.subr.mxu0 0.0
        %1860 = vmatpush2.msra.mxu0 0.0
        %1861 = vmatprep.subr.mxu0 0.0
        %1862 = vmatpush2.msra.mxu0 0.0
        %1863 = vmatprep.subr.mxu0 0.0
        %1864 = vmatpush2.msra.mxu0 0.0
        %1865 = vmatprep.subr.mxu0 0.0
        %1866 = vmatpush2.msra.mxu0 0.0
        %1867 = vmatprep.subr.mxu0 0.0
        %1868 = vmatpush2.msra.mxu0 0.0
        %1869 = vmatprep.subr.mxu0 0.0
        %1870 = vmatpush2.msra.mxu0 0.0
        %1871 = vmatprep.subr.mxu0 0.0
        %1872 = vmatpush2.msra.mxu0 0.0
        %1873 = vmatprep.subr.mxu0 0.0
        %1874 = vmatpush2.msra.mxu0 0.0
        %1875 = vmatprep.mubr.f32.mxu0 0.0
        %1876 = vmatmul.mubr.f32.gmra.mxu0 %v1728
        %v1877 = vpop.f32.mrf.mxu0
        %v1878 = vadd.f32 %v1809, %v1877
        %v1879 = vpop.f32.mrf.mxu0
        %1880 = vdwg.mxu0
        %v1881 = vmul.f32 %v1797, %v1878
        %v1882 = vmul.f32 %v1881, 0.5
        %v1883 = vmul.f32 %v1881, 0.70710677
        %v1884 = verf.f32.pop %v1883
        %v1885 = vadd.f32 %v1884, 1.0
        %v1886 = vmul.f32 %v1882, %v1885
        %v1887 = vld [vmem:[%s12] sm:$0xff]
        %v1888 = vld [vmem:[%s12 + $0x8] sm:$0xff]
        %v1889 = vld [vmem:[%s12 + $0x10] sm:$0xff]
        %v1890 = vld [vmem:[%s12 + $0x18] sm:$0xff]
        %v1891 = vld [vmem:[%s12 + $0x20] sm:$0xff]
        %v1892 = vld [vmem:[%s12 + $0x28] sm:$0xff]
        %v1893 = vld [vmem:[%s12 + $0x30] sm:$0xff]
        %v1894 = vld [vmem:[%s12 + $0x38] sm:$0xff]
        %v1895 = vld [vmem:[%s13] sm:$0x1]
        %v1897 = vlaneseq
        %v1898 = vshrl.u32 %v1897, 7
        %v1899 = vsub.s32 0, %v1898
        %v1900 = vrot.slane %v1895, %v1899
        %vm1902 = vcmask 523264
        %v1904 = vsel %vm1902, %v1886, 0
        %1906 = vmatprep.subr.mxu0 0.0
        %1907 = vmatpush1.msra.mxu0 0.0
        %1908 = vmatprep.subr.mxu0 0.0
        %1909 = vmatpush1.msra.mxu0 0.0
        %1910 = vmatprep.subr.mxu0 0.0
        %1911 = vmatpush1.msra.mxu0 0.0
        %1912 = vmatprep.subr.mxu0 0.0
        %1913 = vmatpush1.msra.mxu0 0.0
        %1914 = vmatprep.subr.mxu0 0.0
        %1915 = vmatpush1.msra.mxu0 0.0
        %1916 = vmatprep.subr.mxu0 0.0
        %1917 = vmatpush1.msra.mxu0 0.0
        %1918 = vmatprep.subr.mxu0 0.0
        %1919 = vmatpush1.msra.mxu0 0.0
        %1920 = vmatprep.subr.mxu0 0.0
        %1921 = vmatpush1.msra.mxu0 0.0
        %1922 = vmatprep.subr.mxu0 0.0
        %1923 = vmatpush1.msra.mxu0 %v1894
        %1924 = vmatprep.subr.mxu0 0.0
        %1925 = vmatpush1.msra.mxu0 %v1893
        %1926 = vmatprep.subr.mxu0 0.0
        %1927 = vmatpush1.msra.mxu0 %v1892
        %1928 = vmatprep.subr.mxu0 0.0
        %1929 = vmatpush1.msra.mxu0 %v1891
        %1930 = vmatprep.subr.mxu0 0.0
        %1931 = vmatpush1.msra.mxu0 %v1890
        %1932 = vmatprep.subr.mxu0 0.0
        %1933 = vmatpush1.msra.mxu0 %v1889
        %1934 = vmatprep.subr.mxu0 0.0
        %1935 = vmatpush1.msra.mxu0 %v1888
        %1936 = vmatprep.subr.mxu0 0.0
        %1937 = vmatpush1.msra.mxu0 %v1887
        %1938 = vmatprep.subr.mxu0 0.0
        %1939 = vmatpush2.msra.mxu0 0.0
        %1940 = vmatprep.subr.mxu0 0.0
        %1941 = vmatpush2.msra.mxu0 0.0
        %1942 = vmatprep.subr.mxu0 0.0
        %1943 = vmatpush2.msra.mxu0 0.0
        %1944 = vmatprep.subr.mxu0 0.0
        %1945 = vmatpush2.msra.mxu0 0.0
        %1946 = vmatprep.subr.mxu0 0.0
        %1947 = vmatpush2.msra.mxu0 0.0
        %1948 = vmatprep.subr.mxu0 0.0
        %1949 = vmatpush2.msra.mxu0 0.0
        %1950 = vmatprep.subr.mxu0 0.0
        %1951 = vmatpush2.msra.mxu0 0.0
        %1952 = vmatprep.subr.mxu0 0.0
        %1953 = vmatpush2.msra.mxu0 0.0
        %1954 = vmatprep.subr.mxu0 0.0
        %1955 = vmatpush2.msra.mxu0 0.0
        %1956 = vmatprep.subr.mxu0 0.0
        %1957 = vmatpush2.msra.mxu0 0.0
        %1958 = vmatprep.subr.mxu0 0.0
        %1959 = vmatpush2.msra.mxu0 0.0
        %1960 = vmatprep.subr.mxu0 0.0
        %1961 = vmatpush2.msra.mxu0 0.0
        %1962 = vmatprep.subr.mxu0 0.0
        %1963 = vmatpush2.msra.mxu0 0.0
        %1964 = vmatprep.subr.mxu0 0.0
        %1965 = vmatpush2.msra.mxu0 0.0
        %1966 = vmatprep.subr.mxu0 0.0
        %1967 = vmatpush2.msra.mxu0 0.0
        %1968 = vmatprep.subr.mxu0 0.0
        %1969 = vmatpush2.msra.mxu0 0.0
        %1970 = vmatprep.mubr.f32.mxu0 0.0
        %1971 = vmatmul.mubr.f32.gmra.mxu0 %v1904
        %v1972 = vpop.f32.mrf.mxu0
        %v1973 = vadd.f32 %v1900, %v1972
        %v1974 = vpop.f32.mrf.mxu0
        %1975 = vdwg.mxu0
        %v1976 = vadd.f32 %v1699, %v1973
        %1977 = vst.msk [vmem:[%s525] sm:$0xff] %vm734, %v1976
        %s1978 = sand.u32 %s377, 1
        %s1979 = scalar_lea.sflag [#allocation7], %s1978
        %s1980 = sand.u32 %s377, 1
        %s1981 = smul.addr %s1980, 8
        %s1982 = scalar_lea.vmem [#allocation8], %s1981
        // Predicated region
        $region117: #{tpu_custom_call.1} parent=79 // pred_check
          %p1983 = pneg %p387
        $region118: #{tpu_custom_call.1} parent=79 // pred_check_branch
          %1985 = sbr.rel (%p1983) target = $region120
        $region119: #{tpu_custom_call.1} parent=79 // pred_region
          %s1987 = ssub.s32 128, 128
          %1988 = vsyncadd %s1979, %s1987
          %s1989 = sadd.s32 %s35, %s34
          %s1990 = smul.addr %s1989, 128
          %s1991 = scalar_lea.hbm %s15, %s1990
          %s1993 = sshll.u32 %s1982, 4
          %s1994 = int_to_ptr.vmem [resolvable:$true] %s1993
          %1996 = dma.vmem_to_hbm [thread:$0]  %s1994, 128, %s1991, %s1979
        $region120: #{tpu_custom_call.1} parent=79 // pred_fallthru
          _
      $region80: #{tpu_custom_call.1} parent=5 // pred_fallthru
        _
      %p1997 = scmp.le.s32.totalorder 2, %s25
      // Predicated region
      $region121: #{tpu_custom_call.1} parent=5 // pred_check
        %p1998 = pneg %p1997
      $region122: #{tpu_custom_call.1} parent=5 // pred_check_branch
        %2000 = sbr.rel (%p1998) target = $region124
      $region123: #{tpu_custom_call.1} parent=5 // pred_region
        %s2001 = ssub.s32 %s25, 2
        // Predicated region
        $region125: #{tpu_custom_call.1} parent=123 // pred_check
          %p2002 = pneg %p393
        $region126: #{tpu_custom_call.1} parent=123 // pred_check_branch
          %2004 = sbr.rel (%p2002) target = $region128
        $region127: #{tpu_custom_call.1} parent=123 // pred_region
          %s2005 = sand.u32 %s378, 1
          %s2006 = scalar_lea.sflag [#allocation7], %s2005
          %s2007 = sand.u32 %s378, 1
          %s2008 = smul.addr %s2007, 8
          %s2009 = scalar_lea.vmem [#allocation8], %s2008
          %2010 = dma.done %s2006, 128
        $region128: #{tpu_custom_call.1} parent=123 // pred_fallthru
          _
      $region124: #{tpu_custom_call.1} parent=5 // pred_fallthru
        _
    $region6: #{tpu_custom_call.1} parent=1 // loop_footer
      %s29 = sadd.s32 1, %s25
    $region7: #{tpu_custom_call.1} parent=1 // loop_footer_branch
      %24 = sbr.rel target = $region3
    $region8: #{tpu_custom_call.1} parent=1 // loop_exit
      _
    %2011 = vsyncpa [#allocation6], 1
    %s2012 = scalar_lea.sflag [#allocation6], 1
    %2013 = vsyncpa %s2012, 1
    %2014 = vsyncpa [#allocation7], 1
    %s2015 = scalar_lea.sflag [#allocation7], 1
    %2016 = vsyncpa %s2015, 1

</llo_original>
